<compile_context>
chip_gen: v5e
topology: v5e:2x2
jax: 0.10.0
libtpu: 0.0.40
codegen_flags: <defaults>
</compile_context>

<pallas_src>
import functools

import jax
import jax.numpy as jnp
from jax import lax
from jax.experimental import pallas as pl
from jax.experimental.pallas import tpu as pltpu


def _layer_norm(x, gamma, beta, eps=1e-5):
    mu = jnp.mean(x, axis=-1, keepdims=True)
    var = jnp.mean((x - mu) ** 2, axis=-1, keepdims=True)
    return (x - mu) * lax.rsqrt(var + eps) * gamma + beta


# Rows of the packed (7, H) bias / LayerNorm vector slab.
_BQ, _BO, _G1, _BE1, _B2, _G2, _BE2 = range(7)


def encoder_block_kernel(vl_ref, x_ref, wq_ref, wkv_ref, wo_ref, w1_ref, w2_ref,
                         vec_ref, bkv_ref, b1_ref, o_ref, kv_ref,
                         *, num_heads, tq):
    """One (batch, query-tile) grid step of a BERT encoder block."""
    b = pl.program_id(0)
    qi = pl.program_id(1)
    T, H = x_ref.shape[1], x_ref.shape[2]
    d = H // num_heads

    def vrow(i):                                    # packed (1, H) f32 vector
        return vec_ref[i:i + 1, :]

    # ---- K/V projection: once per sequence, cached in VMEM scratch ----
    # (qi axis is "arbitrary"/sequential; scratch persists across grid steps)
    @pl.when(qi == 0)
    def _():
        kv = jnp.dot(x_ref[0], wkv_ref[...],        # (T, 2H) f32 acc on MXU
                     preferred_element_type=jnp.float32)
        kv_ref[...] = (kv + bkv_ref[...]).astype(jnp.bfloat16)

    # ---- query tile, sliced from the resident full-sequence block ----
    q_start = pl.multiple_of(qi * tq, tq)
    x_q = x_ref[0, pl.ds(q_start, tq), :]           # (TQ, H) bf16
    x_q_f = x_q.astype(jnp.float32)

    # Wq / bq already carry the 1/sqrt(d) scale (folded at param-prep time).
    q = jnp.dot(x_q, wq_ref[...], preferred_element_type=jnp.float32) + vrow(_BQ)

    kvc = kv_ref[...]                                # (T, 2H) bf16 cached K|V
    qh = q.reshape(tq, num_heads, d).astype(jnp.bfloat16)
    kh = kvc[:, :H].reshape(T, num_heads, d)
    vh = kvc[:, H:].reshape(T, num_heads, d)

    # key-validity mask, built once for all heads / queries (f32 softmax)
    valid = vl_ref[b]
    key_idx = lax.broadcasted_iota(jnp.int32, (1, T), 1)
    key_ok = (key_idx < valid)[None]                 # (1, 1, T) bool

    s = jnp.einsum('qhd,khd->hqk', qh, kh,
                   preferred_element_type=jnp.float32)   # (nh, TQ, T)
    s = jnp.where(key_ok, s, jnp.float32(-1e6))
    s = s - jnp.max(s, axis=-1, keepdims=True)
    p = jnp.exp(s)
    attn = p * pl.reciprocal(jnp.sum(p, axis=-1, keepdims=True), approx=True)
    ctx = jnp.einsum('hqk,khd->qhd', attn.astype(jnp.bfloat16), vh,
                     preferred_element_type=jnp.float32).reshape(tq, H)

    attn_out = jnp.dot(ctx.astype(jnp.bfloat16), wo_ref[...],
                       preferred_element_type=jnp.float32) + vrow(_BO)

    # ---- AddNorm 1 (f32) ----
    y = _layer_norm(x_q_f + attn_out, vrow(_G1), vrow(_BE1))

    # ---- position-wise FFN ----
    h1 = jnp.maximum(
        jnp.dot(y.astype(jnp.bfloat16), w1_ref[...],
                preferred_element_type=jnp.float32) + b1_ref[...], 0.0)
    h2 = jnp.dot(h1.astype(jnp.bfloat16), w2_ref[...],
                 preferred_element_type=jnp.float32) + vrow(_B2)

    # ---- AddNorm 2 (f32) -> bf16 output ----
    o_ref[0] = _layer_norm(y + h2, vrow(_G2), vrow(_BE2)).astype(o_ref.dtype)


@functools.lru_cache(maxsize=1)
def _chip_config():
    """(query-tile preferences, vmem_limit cap) derived from the local chip."""
    kind = ""
    try:
        kind = jax.devices()[0].device_kind.lower()
    except Exception:
        pass
    vmem_cap = None
    try:
        vmem_cap = int(pltpu.get_tpu_info().vmem_capacity_bytes)
    except Exception:
        vmem_cap = None
    if not vmem_cap or vmem_cap <= 0:
        vmem_cap = (64 << 20) if "v7" in kind else (128 << 20)
    # Leave headroom below physical VMEM (matters on v7x's 64 MiB).
    limit_cap = min(vmem_cap - (8 << 20), 100 << 20)
    # TQ=256 feeds the 256-wide MXU on v6e; 128 on v5e (128-wide MXU) and on
    # VMEM-constrained v7x.
    tq_prefs = (256, 128) if ("v6" in kind and vmem_cap > (64 << 20)) else (128, 256)
    return tq_prefs, limit_cap


def _pick_query_tile(T, prefs):
    if T <= 128:
        return T
    for cand in prefs:
        if T % cand == 0:
            return cand
    return T


def _vmem_limit_bytes(T, TQ, H, F, num_heads, cap):
    w = 2 * (4 * H * H + 2 * H * F) + 4 * (9 * H + F)      # single-buffered weights/vecs
    acts = 2 * 2 * T * H + 2 * 2 * TQ * H                  # bf16 x + out, double-buffered
    kv = 2 * T * 2 * H                                      # bf16 K|V cache scratch
    inter = 4 * (3 * num_heads * TQ * T + 4 * TQ * H + 2 * T * H + TQ * F)
    est = w + acts + kv + inter + (4 << 20)
    return int(min(cap, max(32 << 20, est)))


def _cost_estimate(B, T, TQ, H, F, num_heads):
    d = H // num_heads
    steps = B * (T // TQ)
    kv_flops = B * 2 * T * H * (2 * H)                      # once per sequence
    step_flops = (2 * TQ * H * H                            # Q proj
                  + 4 * num_heads * TQ * T * d              # QK^T + PV
                  + 2 * TQ * H * H                          # output proj
                  + 4 * TQ * H * F)                         # FFN
    w_bytes = 2 * (4 * H * H + 2 * H * F) + 4 * (9 * H + F)  # fetched once
    act_bytes = B * (2 * T * H * 2)                         # bf16 read + write
    return pl.CostEstimate(
        flops=int(kv_flops + steps * step_flops),
        transcendentals=int(steps * num_heads * TQ * T),
        bytes_accessed=int(act_bytes + w_bytes + B * 4))


def _prep_layer(p, num_heads):
    """Fold scale into Wq/bq, fuse Wk|Wv, cast matmul weights to bf16, pack
    the (1,H) bias / LayerNorm vectors into one (7,H) slab + (1,2H) + (1,F)."""
    H = p['wq'].shape[0]
    d = H // num_heads
    scale = 1.0 / jnp.sqrt(jnp.float32(d))
    wq = (p['wq'] * scale).astype(jnp.bfloat16)
    wkv = jnp.concatenate([p['wk'], p['wv']], axis=1).astype(jnp.bfloat16)
    wo = p['wo'].astype(jnp.bfloat16)
    w1 = p['w1'].astype(jnp.bfloat16)
    w2 = p['w2'].astype(jnp.bfloat16)
    vecs = jnp.concatenate([p['bq'] * scale, p['bo'], p['g1'], p['be1'],
                            p['b2'], p['g2'], p['be2']], axis=0).astype(jnp.float32)
    bkv = jnp.concatenate([p['bk'], p['bv']], axis=1).astype(jnp.float32)   # (1, 2H)
    b1 = p['b1'].astype(jnp.float32)                                        # (1, F)
    return wq, wkv, wo, w1, w2, vecs, bkv, b1


def prep_encoder_params(params, num_heads):
    """One-time parameter prep (hoisted out of the forward hot path)."""
    return {
        'emb': {'token_emb': params['token_emb'],
                'segment_emb': params['segment_emb'],
                'pos_emb': params['pos_emb']},
        'layers': tuple(_prep_layer(lp, num_heads) for lp in params['layers']),
    }


def _encoder_block_call(x, valid_lens, layer, num_heads, tq, vmem_limit):
    B, T, H = x.shape
    wq, wkv, wo, w1, w2, vecs, bkv, b1 = layer
    F = w1.shape[1]
    n_q = T // tq

    def const_spec(shape):
        n = len(shape)
        idx = lambda b, qi, vl, _n=n: (0,) * _n      # constant -> fetched once
        try:
            # single-buffer the never-changing weight blocks (saves VMEM)
            return pl.BlockSpec(shape, idx, pipeline_mode=pl.Buffered(1))
        except Exception:
            return pl.BlockSpec(shape, idx)

    in_specs = [
        pl.BlockSpec((1, T, H), lambda b, qi, vl: (b, 0, 0)),   # x: full seq, once per b
        const_spec((H, H)),            # Wq (pre-scaled, bf16)
        const_spec((H, 2 * H)),        # [Wk | Wv] fused (bf16)
        const_spec((H, H)),            # Wo (bf16)
        const_spec((H, F)),            # FFN dense1 (bf16)
        const_spec((F, H)),            # FFN dense2 (bf16)
        const_spec((7, H)),            # packed bias / LayerNorm vectors (f32)
        const_spec((1, 2 * H)),        # [bk | bv] (f32)
        const_spec((1, F)),            # FFN dense1 bias (f32)
    ]
    out_spec = pl.BlockSpec((1, tq, H), lambda b, qi, vl: (b, qi, 0))

    kernel = functools.partial(encoder_block_kernel, num_heads=num_heads, tq=tq)
    return pl.pallas_call(
        kernel,
        out_shape=jax.ShapeDtypeStruct((B, T, H), jnp.bfloat16),
        grid_spec=pltpu.PrefetchScalarGridSpec(
            num_scalar_prefetch=1,
            grid=(B, n_q),
            in_specs=in_specs,
            out_specs=out_spec,
            scratch_shapes=[pltpu.VMEM((T, 2 * H), jnp.bfloat16)],   # K|V cache
        ),
        compiler_params=pltpu.CompilerParams(
            # qi axis must be sequential so the cached K/V scratch is reused
            dimension_semantics=("parallel", "arbitrary"),
            vmem_limit_bytes=vmem_limit,
        ),
        cost_estimate=_cost_estimate(B, T, tq, H, F, num_heads),
    )(valid_lens, x, wq, wkv, wo, w1, w2, vecs, bkv, b1)


@functools.partial(jax.jit, static_argnames=("num_heads", "tq", "vmem_limit"))
def _bert_encoder_jit(tokens, segments, valid_lens, emb, layers, *,
                      num_heads, tq, vmem_limit):
    # Embedding lookups (gathers) are XLA glue; encoder blocks run in Pallas.
    X = emb['token_emb'][tokens] + emb['segment_emb'][segments]
    X = X + emb['pos_emb'][:, :tokens.shape[1], :]
    X = X.astype(jnp.bfloat16)           # bf16 activations in HBM between layers
    for layer in layers:
        X = _encoder_block_call(X, valid_lens, layer, num_heads, tq, vmem_limit)
    return X.astype(jnp.float32)


def bert_encoder_forward(tokens, segments, valid_lens, prepped, num_heads):
    T = tokens.shape[1]
    H = prepped['emb']['token_emb'].shape[1]
    F = prepped['layers'][0][3].shape[1]            # w1 is index 3
    tq_prefs, limit_cap = _chip_config()
    tq = _pick_query_tile(T, tq_prefs)
    vmem_limit = _vmem_limit_bytes(T, tq, H, F, num_heads, limit_cap)
    return _bert_encoder_jit(tokens, segments, valid_lens,
                             prepped['emb'], prepped['layers'],
                             num_heads=num_heads, tq=tq, vmem_limit=vmem_limit)


def init_params(key, vocab_size, num_hiddens, ffn_num_hiddens, num_layers, max_len):
    H, F = num_hiddens, ffn_num_hiddens
    keys = jax.random.split(key, 3 + num_layers)

    def lin(k, fan_in, shape):
        bound = 1.0 / jnp.sqrt(jnp.float32(fan_in))
        return jax.random.uniform(k, shape, jnp.float32, -bound, bound)

    params = {
        'token_emb': jax.random.normal(keys[0], (vocab_size, H), jnp.float32),
        'segment_emb': jax.random.normal(keys[1], (2, H), jnp.float32),
        'pos_emb': jax.random.normal(keys[2], (1, max_len, H), jnp.float32),
        'layers': [],
    }
    for i in range(num_layers):
        lk = jax.random.split(keys[3 + i], 12)
        layer = {
            'wq': lin(lk[0], H, (H, H)), 'bq': lin(lk[1], H, (1, H)),
            'wk': lin(lk[2], H, (H, H)), 'bk': lin(lk[3], H, (1, H)),
            'wv': lin(lk[4], H, (H, H)), 'bv': lin(lk[5], H, (1, H)),
            'wo': lin(lk[6], H, (H, H)), 'bo': lin(lk[7], H, (1, H)),
            'g1': jnp.ones((1, H), jnp.float32), 'be1': jnp.zeros((1, H), jnp.float32),
            'w1': lin(lk[8], H, (H, F)), 'b1': lin(lk[9], H, (1, F)),
            'w2': lin(lk[10], F, (F, H)), 'b2': lin(lk[11], F, (1, H)),
            'g2': jnp.ones((1, H), jnp.float32), 'be2': jnp.zeros((1, H), jnp.float32),
        }
        params['layers'].append(layer)
    return params


if __name__ == "__main__":
    # Small, forward-consistent shapes.  (Real runs should use H, F that are
    # multiples of 128 for lane-dense stores / full MXU utilization.)
    VOCAB, H, F = 100, 32, 64
    NUM_HEADS, NUM_LAYERS = 2, 2
    B, T, MAX_LEN = 2, 8, 64

    key = jax.random.PRNGKey(0)
    k_param, k_tok, k_seg = jax.random.split(key, 3)

    params = init_params(k_param, VOCAB, H, F, NUM_LAYERS, MAX_LEN)
    prepped = prep_encoder_params(params, NUM_HEADS)            # one-time prep
    tokens = jax.random.randint(k_tok, (B, T), 0, VOCAB, dtype=jnp.int32)
    segments = jax.random.randint(k_seg, (B, T), 0, 2, dtype=jnp.int32)
    valid_lens = jnp.array([T, 5], dtype=jnp.int32)

    out = bert_encoder_forward(tokens, segments, valid_lens, prepped, NUM_HEADS)
    out = jax.block_until_ready(out)
    assert out.shape == (B, T, H)
    assert bool(jnp.isfinite(out).all())
    print("KERNEL_OK")
</pallas_src>

<mosaic_0001>
module attributes {stable_mosaic.version = 11 : i64} {
  func.func @encoder_block_kernel(%arg0: i32, %arg1: i32, %arg2: memref<2xi32, #tpu.memory_space<smem>>, %arg3: memref<1x8x32xbf16, #tpu.memory_space<vmem>>, %arg4: memref<32x32xbf16, #tpu.memory_space<vmem>>, %arg5: memref<32x64xbf16, #tpu.memory_space<vmem>>, %arg6: memref<32x32xbf16, #tpu.memory_space<vmem>>, %arg7: memref<32x64xbf16, #tpu.memory_space<vmem>>, %arg8: memref<64x32xbf16, #tpu.memory_space<vmem>>, %arg9: memref<7x32xf32, #tpu.memory_space<vmem>>, %arg10: memref<1x64xf32, #tpu.memory_space<vmem>>, %arg11: memref<1x64xf32, #tpu.memory_space<vmem>>, %arg12: memref<1x8x32xbf16, #tpu.memory_space<vmem>>, %arg13: memref<8x64xbf16, #tpu.memory_space<vmem>>) attributes {dimension_semantics = [#tpu.dimension_semantics<parallel>, #tpu.dimension_semantics<arbitrary>], iteration_bounds = array<i64: 2, 1>, scalar_prefetch = 1 : i64, scratch_operands = 1 : i64, tpu.core_type = #tpu.core_type<tc>, window_params = [{transform_indices = @transform_0, window_bounds = array<i64: 1, 8, 32>}, {pipeline_mode = #tpu.pipeline_mode<synchronous>, transform_indices = @transform_1, window_bounds = array<i64: 32, 32>}, {pipeline_mode = #tpu.pipeline_mode<synchronous>, transform_indices = @transform_2, window_bounds = array<i64: 32, 64>}, {pipeline_mode = #tpu.pipeline_mode<synchronous>, transform_indices = @transform_3, window_bounds = array<i64: 32, 32>}, {pipeline_mode = #tpu.pipeline_mode<synchronous>, transform_indices = @transform_4, window_bounds = array<i64: 32, 64>}, {pipeline_mode = #tpu.pipeline_mode<synchronous>, transform_indices = @transform_5, window_bounds = array<i64: 64, 32>}, {pipeline_mode = #tpu.pipeline_mode<synchronous>, transform_indices = @transform_6, window_bounds = array<i64: 7, 32>}, {pipeline_mode = #tpu.pipeline_mode<synchronous>, transform_indices = @transform_7, window_bounds = array<i64: 1, 64>}, {pipeline_mode = #tpu.pipeline_mode<synchronous>, transform_indices = @transform_8, window_bounds = array<i64: 1, 64>}, {transform_indices = @transform_9, window_bounds = array<i64: 1, 8, 32>}]} {
    %c0_i32 = arith.constant 0 : i32
    %0 = arith.cmpi eq, %arg1, %c0_i32 : i32
    %1 = arith.extui %0 : i1 to i32
    %c0_i32_0 = arith.constant 0 : i32
    %2 = arith.cmpi ne, %1, %c0_i32_0 : i32
    scf.if %2 {
      %c0_44 = arith.constant 0 : index
      %c0_45 = arith.constant 0 : index
      %c0_46 = arith.constant 0 : index
      %120 = vector.load %arg3[%c0_44, %c0_45, %c0_46] : memref<1x8x32xbf16, #tpu.memory_space<vmem>>, vector<1x8x32xbf16>
      %121 = vector.shape_cast %120 : vector<1x8x32xbf16> to vector<8x32xbf16>
      %c0_47 = arith.constant 0 : index
      %c0_48 = arith.constant 0 : index
      %122 = vector.load %arg5[%c0_47, %c0_48] : memref<32x64xbf16, #tpu.memory_space<vmem>>, vector<32x64xbf16>
      %cst_49 = arith.constant dense<0.000000e+00> : vector<8x64xf32>
      %123 = tpu.matmul %121, %122, %cst_49 {dimension_numbers = #tpu.dot_dimension_numbers<[1], [0], [0], [1], [0, 0, 1, 1], [], []>} : vector<8x32xbf16>, vector<32x64xbf16>, vector<8x64xf32> -> vector<8x64xf32>
      %c0_50 = arith.constant 0 : index
      %c0_51 = arith.constant 0 : index
      %124 = vector.load %arg10[%c0_50, %c0_51] : memref<1x64xf32, #tpu.memory_space<vmem>>, vector<1x64xf32>
      %125 = vector.broadcast %124 : vector<1x64xf32> to vector<8x64xf32>
      %126 = arith.addf %123, %125 : vector<8x64xf32>
      %127 = arith.truncf %126 : vector<8x64xf32> to vector<8x64xbf16>
      %c0_52 = arith.constant 0 : index
      %c0_53 = arith.constant 0 : index
      %128 = vector.load %arg13[%c0_52, %c0_53] : memref<8x64xbf16, #tpu.memory_space<vmem>>, vector<8x64xbf16>
      tpu.vector_store %arg13[%c0_52, %c0_53], %127 {strides = array<i32>} : memref<8x64xbf16, #tpu.memory_space<vmem>>, vector<8x64xbf16>,
    } else {
    }
    %c8_i32 = arith.constant 8 : i32
    %3 = arith.muli %arg1, %c8_i32 : i32
    %4 = tpu.assume_multiple %3, 8 : i32
    %c0 = arith.constant 0 : index
    %5 = arith.index_cast %4 : i32 to index
    %c0_1 = arith.constant 0 : index
    %6 = vector.load %arg3[%c0, %5, %c0_1] : memref<1x8x32xbf16, #tpu.memory_space<vmem>>, vector<1x8x32xbf16>
    %7 = vector.shape_cast %6 : vector<1x8x32xbf16> to vector<8x32xbf16>
    %8 = arith.extf %7 : vector<8x32xbf16> to vector<8x32xf32>
    %c0_2 = arith.constant 0 : index
    %c0_3 = arith.constant 0 : index
    %9 = vector.load %arg4[%c0_2, %c0_3] : memref<32x32xbf16, #tpu.memory_space<vmem>>, vector<32x32xbf16>
    %cst = arith.constant dense<0.000000e+00> : vector<8x32xf32>
    %10 = tpu.matmul %7, %9, %cst {dimension_numbers = #tpu.dot_dimension_numbers<[1], [0], [0], [1], [0, 0, 1, 1], [], []>} : vector<8x32xbf16>, vector<32x32xbf16>, vector<8x32xf32> -> vector<8x32xf32>
    %c0_4 = arith.constant 0 : index
    %c0_5 = arith.constant 0 : index
    %11 = vector.load %arg9[%c0_4, %c0_5] : memref<7x32xf32, #tpu.memory_space<vmem>>, vector<1x32xf32>
    %12 = vector.broadcast %11 : vector<1x32xf32> to vector<8x32xf32>
    %13 = arith.addf %10, %12 : vector<8x32xf32>
    %c0_6 = arith.constant 0 : index
    %c0_7 = arith.constant 0 : index
    %14 = vector.load %arg13[%c0_6, %c0_7] : memref<8x64xbf16, #tpu.memory_space<vmem>>, vector<8x64xbf16>
    %15 = vector.shape_cast %13 : vector<8x32xf32> to vector<8x2x16xf32>
    %16 = arith.truncf %15 : vector<8x2x16xf32> to vector<8x2x16xbf16>
    %17 = vector.extract_strided_slice %14 {offsets = [0, 0], sizes = [8, 32], strides = [1, 1]} : vector<8x64xbf16> to vector<8x32xbf16>
    %18 = vector.shape_cast %17 : vector<8x32xbf16> to vector<8x2x16xbf16>
    %19 = vector.extract_strided_slice %14 {offsets = [0, 32], sizes = [8, 32], strides = [1, 1]} : vector<8x64xbf16> to vector<8x32xbf16>
    %20 = vector.shape_cast %19 : vector<8x32xbf16> to vector<8x2x16xbf16>
    %21 = arith.index_cast %arg0 : i32 to index
    %22 = memref.load %arg2[%21] : memref<2xi32, #tpu.memory_space<smem>>
    %23 = tpu.iota {dimensions = array<i32: 1>} : vector<1x8xi32>
    %24 = vector.broadcast %22 : i32 to vector<1x8xi32>
    %25 = arith.cmpi slt, %23, %24 : vector<1x8xi32>
    %26 = vector.shape_cast %25 : vector<1x8xi1> to vector<1x1x8xi1>
    "tpu.trace_start"() <{level = 10 : i32, message = "qhd,khd->hqk"}> : () -> ()
    %cst_8 = arith.constant dense<0.000000e+00> : vector<2x8x8xf32>
    %27 = tpu.matmul %16, %18, %cst_8 {dimension_numbers = #tpu.dot_dimension_numbers<[2], [2], [0], [0], [0, 1, 0, 0, 1, 0], [1], [1]>} : vector<8x2x16xbf16>, vector<8x2x16xbf16>, vector<2x8x8xf32> -> vector<2x8x8xf32>
    %cst_9 = arith.constant -1.000000e+06 : f32
    "tpu.trace_stop"() : () -> ()
    %28 = vector.shape_cast %26 : vector<1x1x8xi1> to vector<1x1x8xi1>
    %29 = vector.broadcast %28 : vector<1x1x8xi1> to vector<2x8x8xi1>
    %30 = vector.broadcast %cst_9 : f32 to vector<2x8x8xf32>
    %31 = arith.select %29, %27, %30 : vector<2x8x8xi1>, vector<2x8x8xf32>
    %cst_10 = arith.constant dense<0xFF800000> : vector<2x8xf32>
    %32 = vector.multi_reduction <maximumf>, %31, %cst_10 [2] : vector<2x8x8xf32> to vector<2x8xf32>
    %33 = vector.shape_cast %32 : vector<2x8xf32> to vector<2x8x1xf32>
    %34 = vector.broadcast %33 : vector<2x8x1xf32> to vector<2x8x8xf32>
    %35 = arith.subf %31, %34 : vector<2x8x8xf32>
    %36 = math.exp %35 : vector<2x8x8xf32>
    %cst_11 = arith.constant dense<0.000000e+00> : vector<2x8xf32>
    %37 = vector.multi_reduction <add>, %36, %cst_11 [2] : vector<2x8x8xf32> to vector<2x8xf32>
    %38 = vector.shape_cast %37 : vector<2x8xf32> to vector<2x8x1xf32>
    %39 = tpu.reciprocal %38 {approx = true} : vector<2x8x1xf32> -> vector<2x8x1xf32>
    %40 = vector.broadcast %39 : vector<2x8x1xf32> to vector<2x8x8xf32>
    %41 = arith.mulf %36, %40 : vector<2x8x8xf32>
    %42 = arith.truncf %41 : vector<2x8x8xf32> to vector<2x8x8xbf16>
    "tpu.trace_start"() <{level = 10 : i32, message = "hqk,khd->qhd"}> : () -> ()
    %cst_12 = arith.constant dense<0.000000e+00> : vector<2x16x8xf32>
    %43 = tpu.matmul %20, %42, %cst_12 {dimension_numbers = #tpu.dot_dimension_numbers<[0], [2], [2], [1], [0, 1, 0, 2, 1, 1], [1], [0]>} : vector<8x2x16xbf16>, vector<2x8x8xbf16>, vector<2x16x8xf32> -> vector<2x16x8xf32>
    %44 = tpu.transpose %43, [2, 0, 1] : vector<2x16x8xf32> -> vector<8x2x16xf32>
    "tpu.trace_stop"() : () -> ()
    %45 = vector.shape_cast %44 : vector<8x2x16xf32> to vector<8x32xf32>
    %46 = arith.truncf %45 : vector<8x32xf32> to vector<8x32xbf16>
    %c0_13 = arith.constant 0 : index
    %c0_14 = arith.constant 0 : index
    %47 = vector.load %arg6[%c0_13, %c0_14] : memref<32x32xbf16, #tpu.memory_space<vmem>>, vector<32x32xbf16>
    %cst_15 = arith.constant dense<0.000000e+00> : vector<8x32xf32>
    %48 = tpu.matmul %46, %47, %cst_15 {dimension_numbers = #tpu.dot_dimension_numbers<[1], [0], [0], [1], [0, 0, 1, 1], [], []>} : vector<8x32xbf16>, vector<32x32xbf16>, vector<8x32xf32> -> vector<8x32xf32>
    %c1 = arith.constant 1 : index
    %c0_16 = arith.constant 0 : index
    %49 = vector.load %arg9[%c1, %c0_16] : memref<7x32xf32, #tpu.memory_space<vmem>>, vector<1x32xf32>
    %50 = vector.broadcast %49 : vector<1x32xf32> to vector<8x32xf32>
    %51 = arith.addf %48, %50 : vector<8x32xf32>
    %52 = arith.addf %8, %51 : vector<8x32xf32>
    %c2 = arith.constant 2 : index
    %c0_17 = arith.constant 0 : index
    %53 = vector.load %arg9[%c2, %c0_17] : memref<7x32xf32, #tpu.memory_space<vmem>>, vector<1x32xf32>
    %c3 = arith.constant 3 : index
    %c0_18 = arith.constant 0 : index
    %54 = vector.load %arg9[%c3, %c0_18] : memref<7x32xf32, #tpu.memory_space<vmem>>, vector<1x32xf32>
    %cst_19 = arith.constant dense<0.000000e+00> : vector<8xf32>
    %55 = vector.multi_reduction <add>, %52, %cst_19 [1] : vector<8x32xf32> to vector<8xf32>
    %56 = vector.shape_cast %55 : vector<8xf32> to vector<8x1xf32>
    %cst_20 = arith.constant 3.200000e+01 : f32
    %57 = vector.broadcast %cst_20 : f32 to vector<8x1xf32>
    %58 = arith.divf %56, %57 : vector<8x1xf32>
    %59 = vector.broadcast %58 : vector<8x1xf32> to vector<8x32xf32>
    %60 = arith.subf %52, %59 : vector<8x32xf32>
    %61 = arith.mulf %60, %60 : vector<8x32xf32>
    %cst_21 = arith.constant dense<0.000000e+00> : vector<8xf32>
    %62 = vector.multi_reduction <add>, %61, %cst_21 [1] : vector<8x32xf32> to vector<8xf32>
    %63 = vector.shape_cast %62 : vector<8xf32> to vector<8x1xf32>
    %cst_22 = arith.constant 3.200000e+01 : f32
    %64 = vector.broadcast %cst_22 : f32 to vector<8x1xf32>
    %65 = arith.divf %63, %64 : vector<8x1xf32>
    %66 = vector.broadcast %58 : vector<8x1xf32> to vector<8x32xf32>
    %67 = arith.subf %52, %66 : vector<8x32xf32>
    %cst_23 = arith.constant 9.99999974E-6 : f32
    %68 = vector.broadcast %cst_23 : f32 to vector<8x1xf32>
    %69 = arith.addf %65, %68 : vector<8x1xf32>
    %70 = math.rsqrt %69 : vector<8x1xf32>
    %71 = vector.broadcast %70 : vector<8x1xf32> to vector<8x32xf32>
    %72 = arith.mulf %67, %71 : vector<8x32xf32>
    %73 = vector.broadcast %53 : vector<1x32xf32> to vector<8x32xf32>
    %74 = arith.mulf %72, %73 : vector<8x32xf32>
    %75 = vector.broadcast %54 : vector<1x32xf32> to vector<8x32xf32>
    %76 = arith.addf %74, %75 : vector<8x32xf32>
    %77 = arith.truncf %76 : vector<8x32xf32> to vector<8x32xbf16>
    %c0_24 = arith.constant 0 : index
    %c0_25 = arith.constant 0 : index
    %78 = vector.load %arg7[%c0_24, %c0_25] : memref<32x64xbf16, #tpu.memory_space<vmem>>, vector<32x64xbf16>
    %cst_26 = arith.constant dense<0.000000e+00> : vector<8x64xf32>
    %79 = tpu.matmul %77, %78, %cst_26 {dimension_numbers = #tpu.dot_dimension_numbers<[1], [0], [0], [1], [0, 0, 1, 1], [], []>} : vector<8x32xbf16>, vector<32x64xbf16>, vector<8x64xf32> -> vector<8x64xf32>
    %c0_27 = arith.constant 0 : index
    %c0_28 = arith.constant 0 : index
    %80 = vector.load %arg11[%c0_27, %c0_28] : memref<1x64xf32, #tpu.memory_space<vmem>>, vector<1x64xf32>
    %81 = vector.broadcast %80 : vector<1x64xf32> to vector<8x64xf32>
    %82 = arith.addf %79, %81 : vector<8x64xf32>
    %cst_29 = arith.constant 0.000000e+00 : f32
    %83 = vector.broadcast %cst_29 : f32 to vector<8x64xf32>
    %84 = arith.maximumf %82, %83 : vector<8x64xf32>
    %85 = arith.truncf %84 : vector<8x64xf32> to vector<8x64xbf16>
    %c0_30 = arith.constant 0 : index
    %c0_31 = arith.constant 0 : index
    %86 = vector.load %arg8[%c0_30, %c0_31] : memref<64x32xbf16, #tpu.memory_space<vmem>>, vector<64x32xbf16>
    %cst_32 = arith.constant dense<0.000000e+00> : vector<8x32xf32>
    %87 = tpu.matmul %85, %86, %cst_32 {dimension_numbers = #tpu.dot_dimension_numbers<[1], [0], [0], [1], [0, 0, 1, 1], [], []>} : vector<8x64xbf16>, vector<64x32xbf16>, vector<8x32xf32> -> vector<8x32xf32>
    %c4 = arith.constant 4 : index
    %c0_33 = arith.constant 0 : index
    %88 = vector.load %arg9[%c4, %c0_33] : memref<7x32xf32, #tpu.memory_space<vmem>>, vector<1x32xf32>
    %89 = vector.broadcast %88 : vector<1x32xf32> to vector<8x32xf32>
    %90 = arith.addf %87, %89 : vector<8x32xf32>
    %91 = arith.addf %76, %90 : vector<8x32xf32>
    %c5 = arith.constant 5 : index
    %c0_34 = arith.constant 0 : index
    %92 = vector.load %arg9[%c5, %c0_34] : memref<7x32xf32, #tpu.memory_space<vmem>>, vector<1x32xf32>
    %c6 = arith.constant 6 : index
    %c0_35 = arith.constant 0 : index
    %93 = vector.load %arg9[%c6, %c0_35] : memref<7x32xf32, #tpu.memory_space<vmem>>, vector<1x32xf32>
    %cst_36 = arith.constant dense<0.000000e+00> : vector<8xf32>
    %94 = vector.multi_reduction <add>, %91, %cst_36 [1] : vector<8x32xf32> to vector<8xf32>
    %95 = vector.shape_cast %94 : vector<8xf32> to vector<8x1xf32>
    %cst_37 = arith.constant 3.200000e+01 : f32
    %96 = vector.broadcast %cst_37 : f32 to vector<8x1xf32>
    %97 = arith.divf %95, %96 : vector<8x1xf32>
    %98 = vector.broadcast %97 : vector<8x1xf32> to vector<8x32xf32>
    %99 = arith.subf %91, %98 : vector<8x32xf32>
    %100 = arith.mulf %99, %99 : vector<8x32xf32>
    %cst_38 = arith.constant dense<0.000000e+00> : vector<8xf32>
    %101 = vector.multi_reduction <add>, %100, %cst_38 [1] : vector<8x32xf32> to vector<8xf32>
    %102 = vector.shape_cast %101 : vector<8xf32> to vector<8x1xf32>
    %cst_39 = arith.constant 3.200000e+01 : f32
    %103 = vector.broadcast %cst_39 : f32 to vector<8x1xf32>
    %104 = arith.divf %102, %103 : vector<8x1xf32>
    %105 = vector.broadcast %97 : vector<8x1xf32> to vector<8x32xf32>
    %106 = arith.subf %91, %105 : vector<8x32xf32>
    %cst_40 = arith.constant 9.99999974E-6 : f32
    %107 = vector.broadcast %cst_40 : f32 to vector<8x1xf32>
    %108 = arith.addf %104, %107 : vector<8x1xf32>
    %109 = math.rsqrt %108 : vector<8x1xf32>
    %110 = vector.broadcast %109 : vector<8x1xf32> to vector<8x32xf32>
    %111 = arith.mulf %106, %110 : vector<8x32xf32>
    %112 = vector.broadcast %92 : vector<1x32xf32> to vector<8x32xf32>
    %113 = arith.mulf %111, %112 : vector<8x32xf32>
    %114 = vector.broadcast %93 : vector<1x32xf32> to vector<8x32xf32>
    %115 = arith.addf %113, %114 : vector<8x32xf32>
    %116 = arith.truncf %115 : vector<8x32xf32> to vector<8x32xbf16>
    %c0_41 = arith.constant 0 : index
    %c0_42 = arith.constant 0 : index
    %c0_43 = arith.constant 0 : index
    %117 = vector.load %arg12[%c0_41, %c0_42, %c0_43] : memref<1x8x32xbf16, #tpu.memory_space<vmem>>, vector<1x8x32xbf16>
    %118 = vector.shape_cast %117 : vector<1x8x32xbf16> to vector<8x32xbf16>
    %119 = vector.shape_cast %116 : vector<8x32xbf16> to vector<1x8x32xbf16>
    tpu.vector_store %arg12[%c0_41, %c0_42, %c0_43], %119 {strides = array<i32>} : memref<1x8x32xbf16, #tpu.memory_space<vmem>>, vector<1x8x32xbf16>,
    return
  }
  func.func @transform_0(%arg0: i32, %arg1: i32, %arg2: memref<2xi32, #tpu.memory_space<smem>>) -> (i32, i32, i32) {
    %c0_i32 = arith.constant 0 : i32
    %c0_i32_0 = arith.constant 0 : i32
    %c0_i32_1 = arith.constant 0 : i32
    return %arg0, %c0_i32, %c0_i32_0 : i32, i32, i32
  }
  func.func @transform_1(%arg0: i32, %arg1: i32, %arg2: memref<2xi32, #tpu.memory_space<smem>>) -> (i32, i32) {
    %c0_i32 = arith.constant 0 : i32
    %c0_i32_0 = arith.constant 0 : i32
    %c0_i32_1 = arith.constant 0 : i32
    return %c0_i32, %c0_i32_0 : i32, i32
  }
  func.func @transform_2(%arg0: i32, %arg1: i32, %arg2: memref<2xi32, #tpu.memory_space<smem>>) -> (i32, i32) {
    %c0_i32 = arith.constant 0 : i32
    %c0_i32_0 = arith.constant 0 : i32
    %c0_i32_1 = arith.constant 0 : i32
    return %c0_i32, %c0_i32_0 : i32, i32
  }
  func.func @transform_3(%arg0: i32, %arg1: i32, %arg2: memref<2xi32, #tpu.memory_space<smem>>) -> (i32, i32) {
    %c0_i32 = arith.constant 0 : i32
    %c0_i32_0 = arith.constant 0 : i32
    %c0_i32_1 = arith.constant 0 : i32
    return %c0_i32, %c0_i32_0 : i32, i32
  }
  func.func @transform_4(%arg0: i32, %arg1: i32, %arg2: memref<2xi32, #tpu.memory_space<smem>>) -> (i32, i32) {
    %c0_i32 = arith.constant 0 : i32
    %c0_i32_0 = arith.constant 0 : i32
    %c0_i32_1 = arith.constant 0 : i32
    return %c0_i32, %c0_i32_0 : i32, i32
  }
  func.func @transform_5(%arg0: i32, %arg1: i32, %arg2: memref<2xi32, #tpu.memory_space<smem>>) -> (i32, i32) {
    %c0_i32 = arith.constant 0 : i32
    %c0_i32_0 = arith.constant 0 : i32
    %c0_i32_1 = arith.constant 0 : i32
    return %c0_i32, %c0_i32_0 : i32, i32
  }
  func.func @transform_6(%arg0: i32, %arg1: i32, %arg2: memref<2xi32, #tpu.memory_space<smem>>) -> (i32, i32) {
    %c0_i32 = arith.constant 0 : i32
    %c0_i32_0 = arith.constant 0 : i32
    %c0_i32_1 = arith.constant 0 : i32
    return %c0_i32, %c0_i32_0 : i32, i32
  }
  func.func @transform_7(%arg0: i32, %arg1: i32, %arg2: memref<2xi32, #tpu.memory_space<smem>>) -> (i32, i32) {
    %c0_i32 = arith.constant 0 : i32
    %c0_i32_0 = arith.constant 0 : i32
    %c0_i32_1 = arith.constant 0 : i32
    return %c0_i32, %c0_i32_0 : i32, i32
  }
  func.func @transform_8(%arg0: i32, %arg1: i32, %arg2: memref<2xi32, #tpu.memory_space<smem>>) -> (i32, i32) {
    %c0_i32 = arith.constant 0 : i32
    %c0_i32_0 = arith.constant 0 : i32
    %c0_i32_1 = arith.constant 0 : i32
    return %c0_i32, %c0_i32_0 : i32, i32
  }
  func.func @transform_9(%arg0: i32, %arg1: i32, %arg2: memref<2xi32, #tpu.memory_space<smem>>) -> (i32, i32, i32) {
    %c0_i32 = arith.constant 0 : i32
    %c0_i32_0 = arith.constant 0 : i32
    return %arg0, %arg1, %c0_i32 : i32, i32, i32
  }
}

</mosaic_0001>

<llo_original>
// kernel: _bert_encoder_jit.2
$region0: #{_bert_encoder_jit.2}
  #allocation0 [shape = 'u32[]', space=smem, size = 0x4, offset = 0x4, fixed_abs, tag = 'smem constant byte address 0x4 - core index']
  #allocation1 [shape = 'u32[72,128]{1,0:T(1,128)}', space=vmem, size = 0x9000, scoped, tag = 'internal scratch']
  #allocation2 [shape = 'bf16[8,64]{1,0:T(8,128)(2,1)}', space=vmem, size = 0x800, scoped, tag = 'scratch operand']
  #allocation3 [shape = 's32[1]{0}', space=sflag, size = 0x4, scoped, tag = 'scoped memory for _bert_encoder_jit.2']
  #allocation4 [shape = 'u8[512]{0}', space=smem, size = 0x200, scoped, tag = 'prefetched SMEM operand 0']
  %s0 = inlined_call_operand.vmem [shape: s32[2], index: 0, kind: input, shape index: {}]
  %s1 = inlined_call_operand.vmem [shape: bf16[2,8,32], index: 1, kind: input, shape index: {}]
  %s2 = inlined_call_operand.vmem [shape: bf16[32,32], index: 2, kind: input, shape index: {}]
  %s3 = inlined_call_operand.vmem [shape: bf16[32,64], index: 3, kind: input, shape index: {}]
  %s4 = inlined_call_operand.vmem [shape: bf16[32,32], index: 4, kind: input, shape index: {}]
  %s5 = inlined_call_operand.vmem [shape: bf16[32,64], index: 5, kind: input, shape index: {}]
  %s6 = inlined_call_operand.vmem [shape: bf16[64,32], index: 6, kind: input, shape index: {}]
  %s7 = inlined_call_operand.vmem [shape: f32[7,32], index: 7, kind: input, shape index: {}]
  %s8 = inlined_call_operand.vmem [shape: f32[1,64], index: 8, kind: input, shape index: {}]
  %s9 = inlined_call_operand.vmem [shape: f32[1,64], index: 9, kind: input, shape index: {}]
  %s10 = inlined_call_operand.vmem [shape: bf16[2,8,32], index: 10, kind: output, shape index: {}]
  %s11 = sld [smem:[#allocation0]]
  $region73: #{_bert_encoder_jit.2} parent=0
    _
  %s13 = ssub.s32 1, %s11
  %s14 = scalar_select 0, %s13, %s11
  %s16 = sshll.u32 %s0, 4
  %s17 = int_to_ptr.vmem [resolvable:$true] %s16
  %19 = dma.vmem_to_smem %s17, 16, [#allocation4], [#allocation3]
  %21 = dma.done [#allocation3], 16
  %22 = sfence
  loop: start=0, step=1, limit=4
  $region2: #{_bert_encoder_jit.2} parent=0 // loop_pre_header
    _
  $region3: #{_bert_encoder_jit.2} parent=0 // loop_header
    %s24 = sphi 0, %s28
    %p25 = scmp.ge.s32.totalorder %s24, 4
    %s31 = sphi 0, %s43
    %s32 = sphi 0, %s39
    %s33 = sphi 0, %s31
    %s34 = sphi 0, %s32
    %s35 = sphi 0, %s33
    %s36 = sphi 0, %s34
    %s46 = sphi 0, %s48
    %s49 = sphi 0, %s46
    %s50 = sphi 0, %s49
    %s66 = sphi 0, %s50
    %s70 = sphi 0, %s70
    %s72 = sphi 0, %s70
    %s73 = sphi 0, %s72
    %s87 = sphi 0, %s73
    %s91 = sphi 0, %s91
    %s93 = sphi 0, %s91
    %s94 = sphi 0, %s93
    %s108 = sphi 0, %s94
    %s112 = sphi 0, %s112
    %s114 = sphi 0, %s112
    %s115 = sphi 0, %s114
    %s129 = sphi 0, %s115
    %s133 = sphi 0, %s133
    %s135 = sphi 0, %s133
    %s136 = sphi 0, %s135
    %s150 = sphi 0, %s136
    %s154 = sphi 0, %s154
    %s156 = sphi 0, %s154
    %s157 = sphi 0, %s156
    %s171 = sphi 0, %s157
    %s175 = sphi 0, %s175
    %s177 = sphi 0, %s175
    %s178 = sphi 0, %s177
    %s192 = sphi 0, %s178
    %s196 = sphi 0, %s196
    %s198 = sphi 0, %s196
    %s199 = sphi 0, %s198
    %s213 = sphi 0, %s199
    %s217 = sphi 0, %s217
    %s219 = sphi 0, %s217
    %s220 = sphi 0, %s219
    %s234 = sphi 0, %s220
    %s242 = sphi 0, %s244
    %s245 = sphi 0, %s242
    %s246 = sphi 0, %s245
    %s262 = sphi 0, %s246
  $region4: #{_bert_encoder_jit.2} parent=0 // loop_header_branch
    %27 = sbr.rel (%p25) target = $region8
  $region5: #{_bert_encoder_jit.2} parent=0 // loop_body
    %s29 = ssub.s32 %s24, 1
    %s30 = ssub.s32 %s24, 2
    %s37 = sadd.s32 1, %s32
    %p38 = scmp.ge.s32.totalorder %s37, 1
    %s39 = scalar_select %p38, 0, %s37
    %s40 = sadd.s32 1, %s31
    %s41 = scalar_select %p38, %s40, %s31
    %p42 = scmp.ge.s32.totalorder %s41, 2
    %s43 = scalar_select %p42, 0, %s41
    %s44 = ssub.s32 %s31, %s43
    %p45 = scmp.eq.s32.totalorder %s44, 0
    %s47 = sadd.s32 %s46, 1
    %s48 = scalar_select %p45, %s46, %s47
    %p51 = pneg %p45
    %p52 = scmp.eq.s32.totalorder %s24, 1
    %p53 = por %p51, %p52
    %p54 = scmp.ne.s32.totalorder %s46, %s49
    %p55 = scmp.eq.s32.totalorder %s24, 0
    %p56 = por %p54, %p55
    %p57 = scmp.ne.s32.totalorder %s46, %s49
    %p58 = scmp.eq.s32.totalorder %s29, 1
    %p59 = por %p57, %p58
    %p60 = scmp.ne.s32.totalorder %s49, %s50
    %p61 = scmp.eq.s32.totalorder %s29, 0
    %p62 = por %p60, %p61
    %p63 = scmp.ne.s32.totalorder %s49, %s50
    %p64 = scmp.eq.s32.totalorder %s30, 1
    %p65 = por %p63, %p64
    %p67 = scmp.ne.s32.totalorder %s50, %s66
    %p68 = scmp.eq.s32.totalorder %s30, 0
    %p69 = por %p67, %p68
    %s71 = sadd.s32 %s70, 1
    %p74 = scmp.eq.s32.totalorder %s24, 1
    %p75 = scmp.ne.s32.totalorder %s70, %s72
    %p76 = scmp.eq.s32.totalorder %s24, 0
    %p77 = por %p75, %p76
    %p78 = scmp.ne.s32.totalorder %s70, %s72
    %p79 = scmp.eq.s32.totalorder %s29, 1
    %p80 = por %p78, %p79
    %p81 = scmp.ne.s32.totalorder %s72, %s73
    %p82 = scmp.eq.s32.totalorder %s29, 0
    %p83 = por %p81, %p82
    %p84 = scmp.ne.s32.totalorder %s72, %s73
    %p85 = scmp.eq.s32.totalorder %s30, 1
    %p86 = por %p84, %p85
    %p88 = scmp.ne.s32.totalorder %s73, %s87
    %p89 = scmp.eq.s32.totalorder %s30, 0
    %p90 = por %p88, %p89
    %s92 = sadd.s32 %s91, 1
    %p95 = scmp.eq.s32.totalorder %s24, 1
    %p96 = scmp.ne.s32.totalorder %s91, %s93
    %p97 = scmp.eq.s32.totalorder %s24, 0
    %p98 = por %p96, %p97
    %p99 = scmp.ne.s32.totalorder %s91, %s93
    %p100 = scmp.eq.s32.totalorder %s29, 1
    %p101 = por %p99, %p100
    %p102 = scmp.ne.s32.totalorder %s93, %s94
    %p103 = scmp.eq.s32.totalorder %s29, 0
    %p104 = por %p102, %p103
    %p105 = scmp.ne.s32.totalorder %s93, %s94
    %p106 = scmp.eq.s32.totalorder %s30, 1
    %p107 = por %p105, %p106
    %p109 = scmp.ne.s32.totalorder %s94, %s108
    %p110 = scmp.eq.s32.totalorder %s30, 0
    %p111 = por %p109, %p110
    %s113 = sadd.s32 %s112, 1
    %p116 = scmp.eq.s32.totalorder %s24, 1
    %p117 = scmp.ne.s32.totalorder %s112, %s114
    %p118 = scmp.eq.s32.totalorder %s24, 0
    %p119 = por %p117, %p118
    %p120 = scmp.ne.s32.totalorder %s112, %s114
    %p121 = scmp.eq.s32.totalorder %s29, 1
    %p122 = por %p120, %p121
    %p123 = scmp.ne.s32.totalorder %s114, %s115
    %p124 = scmp.eq.s32.totalorder %s29, 0
    %p125 = por %p123, %p124
    %p126 = scmp.ne.s32.totalorder %s114, %s115
    %p127 = scmp.eq.s32.totalorder %s30, 1
    %p128 = por %p126, %p127
    %p130 = scmp.ne.s32.totalorder %s115, %s129
    %p131 = scmp.eq.s32.totalorder %s30, 0
    %p132 = por %p130, %p131
    %s134 = sadd.s32 %s133, 1
    %p137 = scmp.eq.s32.totalorder %s24, 1
    %p138 = scmp.ne.s32.totalorder %s133, %s135
    %p139 = scmp.eq.s32.totalorder %s24, 0
    %p140 = por %p138, %p139
    %p141 = scmp.ne.s32.totalorder %s133, %s135
    %p142 = scmp.eq.s32.totalorder %s29, 1
    %p143 = por %p141, %p142
    %p144 = scmp.ne.s32.totalorder %s135, %s136
    %p145 = scmp.eq.s32.totalorder %s29, 0
    %p146 = por %p144, %p145
    %p147 = scmp.ne.s32.totalorder %s135, %s136
    %p148 = scmp.eq.s32.totalorder %s30, 1
    %p149 = por %p147, %p148
    %p151 = scmp.ne.s32.totalorder %s136, %s150
    %p152 = scmp.eq.s32.totalorder %s30, 0
    %p153 = por %p151, %p152
    %s155 = sadd.s32 %s154, 1
    %p158 = scmp.eq.s32.totalorder %s24, 1
    %p159 = scmp.ne.s32.totalorder %s154, %s156
    %p160 = scmp.eq.s32.totalorder %s24, 0
    %p161 = por %p159, %p160
    %p162 = scmp.ne.s32.totalorder %s154, %s156
    %p163 = scmp.eq.s32.totalorder %s29, 1
    %p164 = por %p162, %p163
    %p165 = scmp.ne.s32.totalorder %s156, %s157
    %p166 = scmp.eq.s32.totalorder %s29, 0
    %p167 = por %p165, %p166
    %p168 = scmp.ne.s32.totalorder %s156, %s157
    %p169 = scmp.eq.s32.totalorder %s30, 1
    %p170 = por %p168, %p169
    %p172 = scmp.ne.s32.totalorder %s157, %s171
    %p173 = scmp.eq.s32.totalorder %s30, 0
    %p174 = por %p172, %p173
    %s176 = sadd.s32 %s175, 1
    %p179 = scmp.eq.s32.totalorder %s24, 1
    %p180 = scmp.ne.s32.totalorder %s175, %s177
    %p181 = scmp.eq.s32.totalorder %s24, 0
    %p182 = por %p180, %p181
    %p183 = scmp.ne.s32.totalorder %s175, %s177
    %p184 = scmp.eq.s32.totalorder %s29, 1
    %p185 = por %p183, %p184
    %p186 = scmp.ne.s32.totalorder %s177, %s178
    %p187 = scmp.eq.s32.totalorder %s29, 0
    %p188 = por %p186, %p187
    %p189 = scmp.ne.s32.totalorder %s177, %s178
    %p190 = scmp.eq.s32.totalorder %s30, 1
    %p191 = por %p189, %p190
    %p193 = scmp.ne.s32.totalorder %s178, %s192
    %p194 = scmp.eq.s32.totalorder %s30, 0
    %p195 = por %p193, %p194
    %s197 = sadd.s32 %s196, 1
    %p200 = scmp.eq.s32.totalorder %s24, 1
    %p201 = scmp.ne.s32.totalorder %s196, %s198
    %p202 = scmp.eq.s32.totalorder %s24, 0
    %p203 = por %p201, %p202
    %p204 = scmp.ne.s32.totalorder %s196, %s198
    %p205 = scmp.eq.s32.totalorder %s29, 1
    %p206 = por %p204, %p205
    %p207 = scmp.ne.s32.totalorder %s198, %s199
    %p208 = scmp.eq.s32.totalorder %s29, 0
    %p209 = por %p207, %p208
    %p210 = scmp.ne.s32.totalorder %s198, %s199
    %p211 = scmp.eq.s32.totalorder %s30, 1
    %p212 = por %p210, %p211
    %p214 = scmp.ne.s32.totalorder %s199, %s213
    %p215 = scmp.eq.s32.totalorder %s30, 0
    %p216 = por %p214, %p215
    %s218 = sadd.s32 %s217, 1
    %p221 = scmp.eq.s32.totalorder %s24, 1
    %p222 = scmp.ne.s32.totalorder %s217, %s219
    %p223 = scmp.eq.s32.totalorder %s24, 0
    %p224 = por %p222, %p223
    %p225 = scmp.ne.s32.totalorder %s217, %s219
    %p226 = scmp.eq.s32.totalorder %s29, 1
    %p227 = por %p225, %p226
    %p228 = scmp.ne.s32.totalorder %s219, %s220
    %p229 = scmp.eq.s32.totalorder %s29, 0
    %p230 = por %p228, %p229
    %p231 = scmp.ne.s32.totalorder %s219, %s220
    %p232 = scmp.eq.s32.totalorder %s30, 1
    %p233 = por %p231, %p232
    %p235 = scmp.ne.s32.totalorder %s220, %s234
    %p236 = scmp.eq.s32.totalorder %s30, 0
    %p237 = por %p235, %p236
    %s238 = ssub.s32 %s31, %s43
    %s239 = ssub.s32 %s32, %s39
    %s240 = sor.u32 %s238, %s239
    %p241 = scmp.eq.s32.totalorder %s240, 0
    %s243 = sadd.s32 %s242, 1
    %s244 = scalar_select %p241, %s242, %s243
    %p247 = pneg %p241
    %p248 = scmp.eq.s32.totalorder %s24, 1
    %p249 = por %p247, %p248
    %p250 = scmp.ne.s32.totalorder %s242, %s245
    %p251 = scmp.eq.s32.totalorder %s24, 0
    %p252 = por %p250, %p251
    %p253 = scmp.ne.s32.totalorder %s242, %s245
    %p254 = scmp.eq.s32.totalorder %s29, 1
    %p255 = por %p253, %p254
    %p256 = scmp.ne.s32.totalorder %s245, %s246
    %p257 = scmp.eq.s32.totalorder %s29, 0
    %p258 = por %p256, %p257
    %p259 = scmp.ne.s32.totalorder %s245, %s246
    %p260 = scmp.eq.s32.totalorder %s30, 1
    %p261 = por %p259, %p260
    %p263 = scmp.ne.s32.totalorder %s246, %s262
    %p264 = scmp.eq.s32.totalorder %s30, 0
    %p265 = por %p263, %p264
    %p266 = scmp.le.s32.totalorder 1, %s24
    %p267 = scmp.lt.s32.totalorder %s24, 3
    %p268 = pnand %p266, %p267
    %p269 = pneg %p268
    // Predicated region
    $region9: #{_bert_encoder_jit.2} parent=5 // pred_check
      _
    $region10: #{_bert_encoder_jit.2} parent=5 // pred_check_branch
      %271 = sbr.rel (%p268) target = $region12
    $region11: #{_bert_encoder_jit.2} parent=5 // pred_region
      %s272 = ssub.s32 %s24, 1
      // Predicated region
      $region13: #{_bert_encoder_jit.2} parent=11 // pred_check
        %p273 = pneg %p83
      $region14: #{_bert_encoder_jit.2} parent=11 // pred_check_branch
        %275 = sbr.rel (%p273) target = $region16
      $region15: #{_bert_encoder_jit.2} parent=11 // pred_region
        _
      $region16: #{_bert_encoder_jit.2} parent=11 // pred_fallthru
        _
      // Predicated region
      $region17: #{_bert_encoder_jit.2} parent=11 // pred_check
        %p276 = pneg %p104
      $region18: #{_bert_encoder_jit.2} parent=11 // pred_check_branch
        %278 = sbr.rel (%p276) target = $region20
      $region19: #{_bert_encoder_jit.2} parent=11 // pred_region
        _
      $region20: #{_bert_encoder_jit.2} parent=11 // pred_fallthru
        _
      // Predicated region
      $region21: #{_bert_encoder_jit.2} parent=11 // pred_check
        %p279 = pneg %p125
      $region22: #{_bert_encoder_jit.2} parent=11 // pred_check_branch
        %281 = sbr.rel (%p279) target = $region24
      $region23: #{_bert_encoder_jit.2} parent=11 // pred_region
        _
      $region24: #{_bert_encoder_jit.2} parent=11 // pred_fallthru
        _
      // Predicated region
      $region25: #{_bert_encoder_jit.2} parent=11 // pred_check
        %p282 = pneg %p146
      $region26: #{_bert_encoder_jit.2} parent=11 // pred_check_branch
        %284 = sbr.rel (%p282) target = $region28
      $region27: #{_bert_encoder_jit.2} parent=11 // pred_region
        _
      $region28: #{_bert_encoder_jit.2} parent=11 // pred_fallthru
        _
      // Predicated region
      $region29: #{_bert_encoder_jit.2} parent=11 // pred_check
        %p285 = pneg %p167
      $region30: #{_bert_encoder_jit.2} parent=11 // pred_check_branch
        %287 = sbr.rel (%p285) target = $region32
      $region31: #{_bert_encoder_jit.2} parent=11 // pred_region
        _
      $region32: #{_bert_encoder_jit.2} parent=11 // pred_fallthru
        _
      // Predicated region
      $region33: #{_bert_encoder_jit.2} parent=11 // pred_check
        %p288 = pneg %p188
      $region34: #{_bert_encoder_jit.2} parent=11 // pred_check_branch
        %290 = sbr.rel (%p288) target = $region36
      $region35: #{_bert_encoder_jit.2} parent=11 // pred_region
        _
      $region36: #{_bert_encoder_jit.2} parent=11 // pred_fallthru
        _
      // Predicated region
      $region37: #{_bert_encoder_jit.2} parent=11 // pred_check
        %p291 = pneg %p209
      $region38: #{_bert_encoder_jit.2} parent=11 // pred_check_branch
        %293 = sbr.rel (%p291) target = $region40
      $region39: #{_bert_encoder_jit.2} parent=11 // pred_region
        _
      $region40: #{_bert_encoder_jit.2} parent=11 // pred_fallthru
        _
      // Predicated region
      $region41: #{_bert_encoder_jit.2} parent=11 // pred_check
        %p294 = pneg %p230
      $region42: #{_bert_encoder_jit.2} parent=11 // pred_check_branch
        %296 = sbr.rel (%p294) target = $region44
      $region43: #{_bert_encoder_jit.2} parent=11 // pred_region
        _
      $region44: #{_bert_encoder_jit.2} parent=11 // pred_fallthru
        _
    $region12: #{_bert_encoder_jit.2} parent=5 // pred_fallthru
      _
    %p297 = scmp.lt.s32.totalorder %s24, 2
    // Predicated region
    $region45: #{_bert_encoder_jit.2} parent=5 // pred_check
      %p298 = pneg %p297
    $region46: #{_bert_encoder_jit.2} parent=5 // pred_check_branch
      %300 = sbr.rel (%p298) target = $region48
    $region47: #{_bert_encoder_jit.2} parent=5 // pred_region
      // Predicated region
      $region49: #{_bert_encoder_jit.2} parent=47 // pred_check
        %p301 = pneg %p56
      $region50: #{_bert_encoder_jit.2} parent=47 // pred_check_branch
        %303 = sbr.rel (%p301) target = $region52
      $region51: #{_bert_encoder_jit.2} parent=47 // pred_region
        %p304 = scmp.lt.s32.totalorder %s31, 1
        %s305 = scalar_select %p304, %s31, 1
        %s306 = smul.addr %s305, 4
        %s307 = scalar_lea.vmem %s1, %s306
      $region52: #{_bert_encoder_jit.2} parent=47 // pred_fallthru
        _
    $region48: #{_bert_encoder_jit.2} parent=5 // pred_fallthru
      _
    %p308 = scmp.le.s32.totalorder 1, %s24
    %p309 = scmp.lt.s32.totalorder %s24, 3
    %p310 = pnand %p308, %p309
    %p311 = pneg %p310
    // Predicated region
    $region53: #{_bert_encoder_jit.2} parent=5 // pred_check
      _
    $region54: #{_bert_encoder_jit.2} parent=5 // pred_check_branch
      %313 = sbr.rel (%p310) target = $region56
    $region55: #{_bert_encoder_jit.2} parent=5 // pred_region
      %s314 = ssub.s32 %s24, 1
      %p315 = scmp.lt.s32.totalorder %s33, 1
      %s316 = scalar_select %p315, %s33, 1
      %s317 = smul.addr %s316, 4
      %s318 = scalar_lea.vmem %s1, %s317
      %p319 = pneg %p62
      %p320 = pneg %p59
      %p321 = pneg %p83
      %p322 = pneg %p80
      %p323 = pneg %p104
      %p324 = pneg %p101
      %p325 = pneg %p125
      %p326 = pneg %p122
      %p327 = pneg %p146
      %p328 = pneg %p143
      %p329 = pneg %p167
      %p330 = pneg %p164
      %p331 = pneg %p188
      %p332 = pneg %p185
      %p333 = pneg %p209
      %p334 = pneg %p206
      %p335 = pneg %p230
      %p336 = pneg %p227
      %p337 = pneg %p258
      %p338 = pneg %p255
      %p339 = scmp.lt.s32.totalorder %s33, 1
      %s340 = scalar_select %p339, %s33, 1
      %p341 = scmp.lt.s32.totalorder %s34, 0
      %s342 = scalar_select %p341, %s34, 0
      %s343 = sadd.s32 %s342, %s340
      %s344 = smul.addr %s343, 4
      %s345 = scalar_lea.vmem %s10, %s344
      %p346 = scmp.lt.s32.totalorder %s33, 1
      %s347 = scalar_select %p346, %s33, 1
      %s348 = smul.addr %s347, 4
      %s349 = scalar_lea.vmem %s1, %s348
      %p350 = scmp.lt.s32.totalorder %s33, 1
      %s351 = scalar_select %p350, %s33, 1
      %p352 = scmp.lt.s32.totalorder %s34, 0
      %s353 = scalar_select %p352, %s34, 0
      %s354 = sadd.s32 %s353, %s351
      %s355 = smul.addr %s354, 4
      %s356 = scalar_lea.vmem %s10, %s355
      %p358 = scmp.eq.s32.totalorder %s34, 0
      // Predicated region
      $region57: #{_bert_encoder_jit.2} parent=55 // pred_check
        %p359 = pneg %p358
      $region58: #{_bert_encoder_jit.2} parent=55 // pred_check_branch
        %361 = sbr.rel (%p359) target = $region60
      $region59: #{_bert_encoder_jit.2} parent=55 // pred_region
        %v362 = vld [vmem:[%s349] sm:$0xf]
        %v363 = vld [vmem:[%s3] sm:$0xf]
        %v364 = vld [vmem:[%s3 + $0x4] sm:$0xf]
        %v365 = vld [vmem:[%s3 + $0x8] sm:$0xf]
        %v366 = vld [vmem:[%s3 + $0xc] sm:$0xf]
        %v367 = vld [vmem:[%s8] sm:$0x1]
        %v369 = vperm.slane %v367, 0
        %v375 = vunpack.c.l.b16 %v363
        %v376 = vunpack.c.l.b16 %v364
        %v377 = vunpack.c.l.b16 %v365
        %v378 = vunpack.c.l.b16 %v366
        %v379 = vpack.c.b16 %v376, %v375
        %v380 = vpack.c.b16 %v378, %v377
        %vm383 = vcmask 261120
        %v385 = vsel %vm383, %v362, 0
        %387 = vmatpush.bf16.msra.mxu0 0
        %388 = vmatpush.bf16.msra.mxu0 0
        %389 = vmatpush.bf16.msra.mxu0 0
        %390 = vmatpush.bf16.msra.mxu0 0
        %391 = vmatpush.bf16.msra.mxu0 0
        %392 = vmatpush.bf16.msra.mxu0 0
        %393 = vmatpush.bf16.msra.mxu0 %v380
        %394 = vmatpush.bf16.msra.mxu0 %v379
        %395 = vmatmul.bf16.gmra.mxu0 %v385
        %v396 = vpop.f32.mrf.mxu0
        %v397 = vadd.f32 %v369, %v396
        %v398 = vpop.f32.mrf.mxu0
        %399 = vdwg.mxu0
        %v400 = vpack.c.bf16 %v397, %v397
        %vm401 = vcmask 519168
        %402 = vst.msk [vmem:[#allocation2] sm:$0xf] %vm401, %v400
      $region60: #{_bert_encoder_jit.2} parent=55 // pred_fallthru
        _
      %s403 = smul.u32 %s34, 8
      %s404 = sshra.s32 %s403, 3
      %s405 = sand.u32 %s403, 7
      %s406 = smul.addr %s404, 4
      %s407 = scalar_lea.vmem %s349, %s406
      %v408 = vld [vmem:[%s407] sm:$0xf]
      %v409 = vunpack.c.l.bf16 %v408
      %v410 = vld [vmem:[%s2] sm:$0xf]
      %v411 = vld [vmem:[%s2 + $0x4] sm:$0xf]
      %v412 = vld [vmem:[%s2 + $0x8] sm:$0xf]
      %v413 = vld [vmem:[%s2 + $0xc] sm:$0xf]
      %v414 = vld [vmem:[%s7] sm:$0x1]
      %v415 = vperm.slane %v414, 0
      %v420 = vunpack.c.l.b16 %v410
      %v421 = vunpack.c.l.b16 %v411
      %v422 = vunpack.c.l.b16 %v412
      %v423 = vunpack.c.l.b16 %v413
      %v424 = vpack.c.b16 %v421, %v420
      %v425 = vpack.c.b16 %v423, %v422
      %vm428 = vcmask 261120
      %v430 = vsel %vm428, %v408, 0
      %432 = vmatpush.bf16.msra.mxu0 0
      %433 = vmatpush.bf16.msra.mxu0 0
      %434 = vmatpush.bf16.msra.mxu0 0
      %435 = vmatpush.bf16.msra.mxu0 0
      %436 = vmatpush.bf16.msra.mxu0 0
      %437 = vmatpush.bf16.msra.mxu0 0
      %438 = vmatpush.bf16.msra.mxu0 %v425
      %439 = vmatpush.bf16.msra.mxu0 %v424
      %440 = vmatmul.bf16.gmra.mxu0 %v430
      %v441 = vpop.f32.mrf.mxu0
      %v442 = vadd.f32 %v415, %v441
      %v443 = vpop.f32.mrf.mxu0
      %444 = vdwg.mxu0
      %v445 = vld [vmem:[#allocation2] sm:$0xf]
      %447 = vrot.lane.b32.xlu0 %v442, 112
      %v448 = vpop.permute.xlu0 %447
      %v450 = vrot.slane %v442, 4
      %vm451 = vcmask 1047556
      %v452 = vsel %vm451, 0.0, %v450
      %v454 = vunpack.c.l.s4 1983009808
      %v455 = vunpack.c.0.s8 %v454
      %v456 = vperm.slane %v442, %v455
      %v458 = vunpack.c.l.s4 1983009808
      %v459 = vunpack.c.0.s8 %v458
      %v460 = vperm.slane %v452, %v459
      %v461 = vrot.slane %v448, 4
      %v462 = vsel %vm451, 0.0, %v461
      %v464 = vunpack.c.l.s4 1983009808
      %v465 = vunpack.c.0.s8 %v464
      %v466 = vperm.slane %v448, %v465
      %v468 = vunpack.c.l.s4 1983009808
      %v469 = vunpack.c.0.s8 %v468
      %v470 = vperm.slane %v462, %v469
      %v471 = vrot.slane %v466, 4
      %v472 = vsel %vm451, %v471, %v456
      %v473 = vrot.slane %v456, 4
      %v474 = vsel %vm451, %v466, %v473
      %v476 = vunpack.c.l.s4 1934713408
      %v477 = vunpack.c.0.s8 %v476
      %v478 = vperm.slane %v472, %v477
      %v480 = vunpack.c.l.s4 1934713408
      %v481 = vunpack.c.0.s8 %v480
      %v482 = vperm.slane %v474, %v481
      %v483 = vrot.slane %v470, 4
      %v484 = vsel %vm451, %v483, %v460
      %v485 = vrot.slane %v460, 4
      %v486 = vsel %vm451, %v470, %v485
      %v488 = vunpack.c.l.s4 1934713408
      %v489 = vunpack.c.0.s8 %v488
      %v490 = vperm.slane %v484, %v489
      %v492 = vunpack.c.l.s4 1934713408
      %v493 = vunpack.c.0.s8 %v492
      %v494 = vperm.slane %v486, %v493
      %v495 = vrot.slane %v478, 4
      %v496 = vsel %vm451, 0.0, %v495
      %v497 = vrot.slane %v482, 4
      %v498 = vsel %vm451, 0.0, %v497
      %v499 = vrot.slane %v490, 4
      %v500 = vsel %vm451, 0.0, %v499
      %v501 = vrot.slane %v494, 4
      %v502 = vsel %vm451, 0.0, %v501
      %v503 = vpack.c.bf16 %v478, %v478
      %v504 = vpack.c.bf16 %v496, %v496
      %v505 = vpack.c.bf16 %v482, %v482
      %v506 = vpack.c.bf16 %v498, %v498
      %v507 = vpack.c.bf16 %v490, %v490
      %v508 = vpack.c.bf16 %v500, %v500
      %v509 = vpack.c.bf16 %v494, %v494
      %v510 = vpack.c.bf16 %v502, %v502
      %512 = vrot.lane.b32.xlu0 %v445, 112
      %v513 = vpop.permute.xlu0 %512
      %s515 = sld [smem:[#allocation4 + %s33]]
      %v516 = vlaneseq
      %v517 = vand.u32 %v516, 127
      %v518 = vstv %s515
      %vm519 = vcmp.lt.s32.totalorder %v517, %v518
      %v520 = vrot.slane %v507, 4
      %vm521 = vcmask 1047556
      %v522 = vsel %vm521, %v520, %v503
      %v524 = vunpack.c.l.s4 1983009808
      %v525 = vunpack.c.0.s8 %v524
      %v526 = vperm.slane %v522, %v525
      %v527 = vrot.slane %v509, 4
      %v528 = vsel %vm521, %v527, %v505
      %v530 = vunpack.c.l.s4 1983009808
      %v531 = vunpack.c.0.s8 %v530
      %v532 = vperm.slane %v528, %v531
      %v533 = vrot.slane %v532, 4
      %v534 = vsel %vm521, %v533, %v526
      %v536 = vunpack.c.l.s4 1934713408
      %v537 = vunpack.c.0.s8 %v536
      %v538 = vperm.slane %v534, %v537
      %v539 = vrot.slane %v508, 4
      %v540 = vsel %vm521, %v539, %v504
      %v542 = vunpack.c.l.s4 1983009808
      %v543 = vunpack.c.0.s8 %v542
      %v544 = vperm.slane %v540, %v543
      %v545 = vrot.slane %v510, 4
      %v546 = vsel %vm521, %v545, %v506
      %v548 = vunpack.c.l.s4 1983009808
      %v549 = vunpack.c.0.s8 %v548
      %v550 = vperm.slane %v546, %v549
      %v551 = vrot.slane %v550, 4
      %v552 = vsel %vm521, %v551, %v544
      %v554 = vunpack.c.l.s4 1934713408
      %v555 = vunpack.c.0.s8 %v554
      %v556 = vperm.slane %v552, %v555
      %v559 = vpack.i.b16 %v556, %v538
      %v560 = vshrl.u32 %v538, 16
      %v561 = vshrl.u32 %v556, 16
      %v562 = vpack.i.b16 %v561, %v560
      %563 = vxpose.xlu0.c.b16.start [1/8] %v445, 128
      %564 = vxpose.xlu0.c.b16.cont [2/8] 0, 128
      %565 = vxpose.xlu0.c.b16.cont [3/8] 0, 128
      %566 = vxpose.xlu0.c.b16.cont [4/8] 0, 128
      %567 = vxpose.xlu0.c.b16.cont [5/8] 0, 128
      %568 = vxpose.xlu0.c.b16.cont [6/8] 0, 128
      %569 = vxpose.xlu0.c.b16.cont [7/8] 0, 128
      %570 = vxpose.xlu0.c.b16.end [8/8] 0, 128
      %v571 = vpop.trf.xlu0
      %v572 = vpop.trf.xlu0
      %v573 = vpop.trf.xlu0
      %v574 = vpop.trf.xlu0
      %v575 = vpop.trf.xlu0
      %v576 = vpop.trf.xlu0
      %v577 = vpop.trf.xlu0
      %v578 = vpop.trf.xlu0
      %579 = vxpose.xlu0.c.b16.start [1/8] %v513, 128
      %580 = vxpose.xlu0.c.b16.cont [2/8] 0, 128
      %581 = vxpose.xlu0.c.b16.cont [3/8] 0, 128
      %582 = vxpose.xlu0.c.b16.cont [4/8] 0, 128
      %583 = vxpose.xlu0.c.b16.cont [5/8] 0, 128
      %584 = vxpose.xlu0.c.b16.cont [6/8] 0, 128
      %585 = vxpose.xlu0.c.b16.cont [7/8] 0, 128
      %586 = vxpose.xlu0.c.b16.end [8/8] 0, 128
      %v587 = vpop.trf.xlu0
      %v588 = vpop.trf.xlu0
      %v589 = vpop.trf.xlu0
      %v590 = vpop.trf.xlu0
      %v591 = vpop.trf.xlu0
      %v592 = vpop.trf.xlu0
      %v593 = vpop.trf.xlu0
      %v594 = vpop.trf.xlu0
      %vm595 = vcmask 130048
      %v597 = vsel %vm595, %v559, 0
      %599 = vmatpush.bf16.msra.mxu0 0
      %600 = vmatpush.bf16.msra.mxu0 0
      %601 = vmatpush.bf16.msra.mxu0 0
      %602 = vmatpush.bf16.msra.mxu0 0
      %603 = vmatpush.bf16.msra.mxu0 0
      %604 = vmatpush.bf16.msra.mxu0 0
      %605 = vmatpush.bf16.msra.mxu0 0
      %606 = vmatpush.bf16.msra.mxu0 %v571
      %607 = vmatmul.bf16.gmra.mxu0 %v597
      %v608 = vpop.f32.mrf.mxu0
      %v609 = vadd.f32 0.0, %v608
      %v610 = vpop.f32.mrf.mxu0
      %611 = vdwg.mxu0
      %v613 = vsel %vm595, %v562, 0
      %615 = vmatpush.bf16.msra.mxu0 0
      %616 = vmatpush.bf16.msra.mxu0 0
      %617 = vmatpush.bf16.msra.mxu0 0
      %618 = vmatpush.bf16.msra.mxu0 0
      %619 = vmatpush.bf16.msra.mxu0 0
      %620 = vmatpush.bf16.msra.mxu0 0
      %621 = vmatpush.bf16.msra.mxu0 0
      %622 = vmatpush.bf16.msra.mxu0 %v587
      %623 = vmatmul.bf16.gmra.mxu0 %v613
      %v624 = vpop.f32.mrf.mxu0
      %v625 = vadd.f32 0.0, %v624
      %v626 = vpop.f32.mrf.mxu0
      %627 = vdwg.mxu0
      %v628 = vsel %vm519, 1, 0
      %vm629 = vcmp.eq.s32.totalorder %v628, 1
      %v630 = vsel %vm629, %v609, -1000000.0
      %v631 = vsel %vm629, %v625, -1000000.0
      %vm632 = vcmask 64512
      %v633 = vsel %vm632, %v630, -inf
      %634 = vmax.xlane.f32.xlu0 %v633
      %v635 = vpop.xlane.xlu0 %634
      %v636 = vsel %vm632, %v631, -inf
      %637 = vmax.xlane.f32.xlu0 %v636
      %v638 = vpop.xlane.xlu0 %637
      %v639 = vsub.f32 %v630, %v635
      %v640 = vsub.f32 %v631, %v638
      %v641 = vmul.f32 %v639, 1.442695
      %v642 = vpow.pop %v641
      %v643 = vmul.f32 %v640, 1.442695
      %v644 = vpow.pop %v643
      %v645 = vsel %vm632, %v642, 0.0
      %646 = vadd.xlane.f32.xlu0 %v645
      %v647 = vpop.xlane.xlu0 %646
      %v648 = vsel %vm632, %v644, 0.0
      %649 = vadd.xlane.f32.xlu0 %v648
      %v650 = vpop.xlane.xlu0 %649
      %v651 = vrcp.pop %v647
      %v652 = vrcp.pop %v650
      %v653 = vmul.f32 %v642, %v651
      %v654 = vmul.f32 %v644, %v652
      %v655 = vpack.c.bf16 %v653, %v653
      %v656 = vpack.c.bf16 %v654, %v654
      %v657 = vunpack.c.l.b16 %v445
      %v658 = vunpack.c.l.b16 %v513
      %v659 = vpack.c.b16 %v657, %v657
      %v660 = vpack.c.b16 %v658, %v658
      %661 = vrot.lane.b32.xlu0 %v659, 96
      %v662 = vpop.permute.xlu0 %661
      %663 = vrot.lane.b32.xlu0 %v660, 96
      %v664 = vpop.permute.xlu0 %663
      %667 = vxpose.xlu0.c.b16.start [1/8] %v662, 128
      %668 = vxpose.xlu0.c.b16.cont [2/8] 0, 128
      %669 = vxpose.xlu0.c.b16.cont [3/8] 0, 128
      %670 = vxpose.xlu0.c.b16.cont [4/8] 0, 128
      %671 = vxpose.xlu0.c.b16.cont [5/8] 0, 128
      %672 = vxpose.xlu0.c.b16.cont [6/8] 0, 128
      %673 = vxpose.xlu0.c.b16.cont [7/8] 0, 128
      %674 = vxpose.xlu0.c.b16.end [8/8] 0, 128
      %v675 = vpop.trf.xlu0
      %v676 = vpop.trf.xlu0
      %v677 = vpop.trf.xlu0
      %v678 = vpop.trf.xlu0
      %v679 = vpop.trf.xlu0
      %v680 = vpop.trf.xlu0
      %v681 = vpop.trf.xlu0
      %v682 = vpop.trf.xlu0
      %683 = vxpose.xlu0.c.b16.start [1/8] %v664, 128
      %684 = vxpose.xlu0.c.b16.cont [2/8] 0, 128
      %685 = vxpose.xlu0.c.b16.cont [3/8] 0, 128
      %686 = vxpose.xlu0.c.b16.cont [4/8] 0, 128
      %687 = vxpose.xlu0.c.b16.cont [5/8] 0, 128
      %688 = vxpose.xlu0.c.b16.cont [6/8] 0, 128
      %689 = vxpose.xlu0.c.b16.cont [7/8] 0, 128
      %690 = vxpose.xlu0.c.b16.end [8/8] 0, 128
      %v691 = vpop.trf.xlu0
      %v692 = vpop.trf.xlu0
      %v693 = vpop.trf.xlu0
      %v694 = vpop.trf.xlu0
      %v695 = vpop.trf.xlu0
      %v696 = vpop.trf.xlu0
      %v697 = vpop.trf.xlu0
      %v698 = vpop.trf.xlu0
      %v700 = vsel %vm632, %v675, 0
      %v703 = vsel %vm632, %v655, 0
      %705 = vmatpush.bf16.xpose.msra.mxu0 0
      %706 = vmatpush.bf16.xpose.msra.mxu0 0
      %707 = vmatpush.bf16.xpose.msra.mxu0 0
      %708 = vmatpush.bf16.xpose.msra.mxu0 0
      %709 = vmatpush.bf16.xpose.msra.mxu0 0
      %710 = vmatpush.bf16.xpose.msra.mxu0 0
      %711 = vmatpush.bf16.xpose.msra.mxu0 0
      %712 = vmatpush.bf16.xpose.msra.mxu0 %v703
      %713 = vmatmul.bf16.gmra.mxu0 %v700
      %v714 = vpop.f32.mrf.mxu0
      %v715 = vadd.f32 0.0, %v714
      %v716 = vpop.f32.mrf.mxu0
      %v717 = vadd.f32 0.0, %v716
      %718 = vdwg.mxu0
      %v720 = vsel %vm632, %v691, 0
      %v723 = vsel %vm632, %v656, 0
      %725 = vmatpush.bf16.xpose.msra.mxu0 0
      %726 = vmatpush.bf16.xpose.msra.mxu0 0
      %727 = vmatpush.bf16.xpose.msra.mxu0 0
      %728 = vmatpush.bf16.xpose.msra.mxu0 0
      %729 = vmatpush.bf16.xpose.msra.mxu0 0
      %730 = vmatpush.bf16.xpose.msra.mxu0 0
      %731 = vmatpush.bf16.xpose.msra.mxu0 0
      %732 = vmatpush.bf16.xpose.msra.mxu0 %v723
      %733 = vmatmul.bf16.gmra.mxu0 %v720
      %v734 = vpop.f32.mrf.mxu0
      %v735 = vadd.f32 0.0, %v734
      %v736 = vpop.f32.mrf.mxu0
      %v737 = vadd.f32 0.0, %v736
      %738 = vdwg.mxu0
      %739 = vxpose.xlu0.b32.start [1/16] %v715, 128
      %740 = vxpose.xlu0.b32.cont [2/16] %v717, 128
      %741 = vxpose.xlu0.b32.cont [3/16] 0.0, 128
      %742 = vxpose.xlu0.b32.cont [4/16] 0.0, 128
      %743 = vxpose.xlu0.b32.cont [5/16] 0.0, 128
      %744 = vxpose.xlu0.b32.cont [6/16] 0.0, 128
      %745 = vxpose.xlu0.b32.cont [7/16] 0.0, 128
      %746 = vxpose.xlu0.b32.cont [8/16] 0.0, 128
      %747 = vxpose.xlu0.b32.cont [9/16] 0.0, 128
      %748 = vxpose.xlu0.b32.cont [10/16] 0.0, 128
      %749 = vxpose.xlu0.b32.cont [11/16] 0.0, 128
      %750 = vxpose.xlu0.b32.cont [12/16] 0.0, 128
      %751 = vxpose.xlu0.b32.cont [13/16] 0.0, 128
      %752 = vxpose.xlu0.b32.cont [14/16] 0.0, 128
      %753 = vxpose.xlu0.b32.cont [15/16] 0.0, 128
      %754 = vxpose.xlu0.b32.end [16/16] 0.0, 128
      %v755 = vpop.trf.xlu0
      %v756 = vpop.trf.xlu0
      %v757 = vpop.trf.xlu0
      %v758 = vpop.trf.xlu0
      %v759 = vpop.trf.xlu0
      %v760 = vpop.trf.xlu0
      %v761 = vpop.trf.xlu0
      %v762 = vpop.trf.xlu0
      %v763 = vpop.trf.xlu0
      %v764 = vpop.trf.xlu0
      %v765 = vpop.trf.xlu0
      %v766 = vpop.trf.xlu0
      %v767 = vpop.trf.xlu0
      %v768 = vpop.trf.xlu0
      %v769 = vpop.trf.xlu0
      %v770 = vpop.trf.xlu0
      %771 = vxpose.xlu0.b32.start [1/16] %v735, 128
      %772 = vxpose.xlu0.b32.cont [2/16] %v737, 128
      %773 = vxpose.xlu0.b32.cont [3/16] 0.0, 128
      %774 = vxpose.xlu0.b32.cont [4/16] 0.0, 128
      %775 = vxpose.xlu0.b32.cont [5/16] 0.0, 128
      %776 = vxpose.xlu0.b32.cont [6/16] 0.0, 128
      %777 = vxpose.xlu0.b32.cont [7/16] 0.0, 128
      %778 = vxpose.xlu0.b32.cont [8/16] 0.0, 128
      %779 = vxpose.xlu0.b32.cont [9/16] 0.0, 128
      %780 = vxpose.xlu0.b32.cont [10/16] 0.0, 128
      %781 = vxpose.xlu0.b32.cont [11/16] 0.0, 128
      %782 = vxpose.xlu0.b32.cont [12/16] 0.0, 128
      %783 = vxpose.xlu0.b32.cont [13/16] 0.0, 128
      %784 = vxpose.xlu0.b32.cont [14/16] 0.0, 128
      %785 = vxpose.xlu0.b32.cont [15/16] 0.0, 128
      %786 = vxpose.xlu0.b32.end [16/16] 0.0, 128
      %v787 = vpop.trf.xlu0
      %v788 = vpop.trf.xlu0
      %v789 = vpop.trf.xlu0
      %v790 = vpop.trf.xlu0
      %v791 = vpop.trf.xlu0
      %v792 = vpop.trf.xlu0
      %v793 = vpop.trf.xlu0
      %v794 = vpop.trf.xlu0
      %v795 = vpop.trf.xlu0
      %v796 = vpop.trf.xlu0
      %v797 = vpop.trf.xlu0
      %v798 = vpop.trf.xlu0
      %v799 = vpop.trf.xlu0
      %v800 = vpop.trf.xlu0
      %v801 = vpop.trf.xlu0
      %v802 = vpop.trf.xlu0
      %v803 = vrot.slane %v755, 4
      %v804 = vsel %vm451, 0.0, %v803
      %v806 = vunpack.c.l.s4 1983009808
      %v807 = vunpack.c.0.s8 %v806
      %v808 = vperm.slane %v755, %v807
      %v810 = vunpack.c.l.s4 1983009808
      %v811 = vunpack.c.0.s8 %v810
      %v812 = vperm.slane %v804, %v811
      %v813 = vrot.slane %v787, 4
      %v814 = vsel %vm451, 0.0, %v813
      %v816 = vunpack.c.l.s4 1983009808
      %v817 = vunpack.c.0.s8 %v816
      %v818 = vperm.slane %v787, %v817
      %v820 = vunpack.c.l.s4 1983009808
      %v821 = vunpack.c.0.s8 %v820
      %v822 = vperm.slane %v814, %v821
      %v823 = vrot.slane %v818, 4
      %v824 = vsel %vm451, %v823, %v808
      %v825 = vrot.slane %v808, 4
      %v826 = vsel %vm451, %v818, %v825
      %v828 = vunpack.c.l.s4 1934713408
      %v829 = vunpack.c.0.s8 %v828
      %v830 = vperm.slane %v824, %v829
      %v832 = vunpack.c.l.s4 1934713408
      %v833 = vunpack.c.0.s8 %v832
      %v834 = vperm.slane %v826, %v833
      %v835 = vrot.slane %v822, 4
      %v836 = vsel %vm451, %v835, %v812
      %v837 = vrot.slane %v812, 4
      %v838 = vsel %vm451, %v822, %v837
      %v840 = vunpack.c.l.s4 1934713408
      %v841 = vunpack.c.0.s8 %v840
      %v842 = vperm.slane %v836, %v841
      %v844 = vunpack.c.l.s4 1934713408
      %v845 = vunpack.c.0.s8 %v844
      %v846 = vperm.slane %v838, %v845
      %v847 = vrot.slane %v830, 4
      %v848 = vsel %vm451, 0.0, %v847
      %v849 = vrot.slane %v834, 4
      %v850 = vsel %vm451, 0.0, %v849
      %v851 = vrot.slane %v842, 4
      %v852 = vsel %vm451, 0.0, %v851
      %v853 = vrot.slane %v846, 4
      %v854 = vsel %vm451, 0.0, %v853
      %v855 = vsel %vm451, %v849, %v830
      %v857 = vunpack.c.l.s4 1983009808
      %v858 = vunpack.c.0.s8 %v857
      %v859 = vperm.slane %v855, %v858
      %v860 = vrot.slane %v850, 4
      %v861 = vsel %vm451, %v860, %v848
      %v863 = vunpack.c.l.s4 1983009808
      %v864 = vunpack.c.0.s8 %v863
      %v865 = vperm.slane %v861, %v864
      %v866 = vsel %vm451, %v853, %v842
      %v868 = vunpack.c.l.s4 1983009808
      %v869 = vunpack.c.0.s8 %v868
      %v870 = vperm.slane %v866, %v869
      %v871 = vrot.slane %v854, 4
      %v872 = vsel %vm451, %v871, %v852
      %v874 = vunpack.c.l.s4 1983009808
      %v875 = vunpack.c.0.s8 %v874
      %v876 = vperm.slane %v872, %v875
      %v877 = vrot.slane %v865, 4
      %v878 = vsel %vm451, %v877, %v859
      %v880 = vunpack.c.l.s4 1934713408
      %v881 = vunpack.c.0.s8 %v880
      %v882 = vperm.slane %v878, %v881
      %v883 = vrot.slane %v876, 4
      %v884 = vsel %vm451, %v883, %v870
      %v886 = vunpack.c.l.s4 1934713408
      %v887 = vunpack.c.0.s8 %v886
      %v888 = vperm.slane %v884, %v887
      %v889 = vrot.slane %v888, 4
      %v890 = vsel %vm451, %v889, %v882
      %v891 = vrot.slane %v882, 4
      %v892 = vsel %vm451, %v888, %v891
      %894 = vrot.lane.b32.xlu0 %v892, 16
      %v895 = vpop.permute.xlu0 %894
      %v897 = vsel %vm595, %v890, %v895
      %v898 = vpack.c.bf16 %v897, %v897
      %v899 = vld [vmem:[%s4] sm:$0xf]
      %v900 = vld [vmem:[%s4 + $0x4] sm:$0xf]
      %v901 = vld [vmem:[%s4 + $0x8] sm:$0xf]
      %v902 = vld [vmem:[%s4 + $0xc] sm:$0xf]
      %v903 = vld [vmem:[%s7 + $0x1] sm:$0x1]
      %v904 = vperm.slane %v903, 0
      %v909 = vunpack.c.l.b16 %v899
      %v910 = vunpack.c.l.b16 %v900
      %v911 = vunpack.c.l.b16 %v901
      %v912 = vunpack.c.l.b16 %v902
      %v913 = vpack.c.b16 %v910, %v909
      %v914 = vpack.c.b16 %v912, %v911
      %v918 = vsel %vm428, %v898, 0
      %920 = vmatpush.bf16.msra.mxu0 0
      %921 = vmatpush.bf16.msra.mxu0 0
      %922 = vmatpush.bf16.msra.mxu0 0
      %923 = vmatpush.bf16.msra.mxu0 0
      %924 = vmatpush.bf16.msra.mxu0 0
      %925 = vmatpush.bf16.msra.mxu0 0
      %926 = vmatpush.bf16.msra.mxu0 %v914
      %927 = vmatpush.bf16.msra.mxu0 %v913
      %928 = vmatmul.bf16.gmra.mxu0 %v918
      %v929 = vpop.f32.mrf.mxu0
      %v930 = vadd.f32 %v904, %v929
      %v931 = vpop.f32.mrf.mxu0
      %932 = vdwg.mxu0
      %v933 = vadd.f32 %v409, %v930
      %v934 = vld [vmem:[%s7 + $0x2] sm:$0x1]
      %v935 = vld [vmem:[%s7 + $0x3] sm:$0x1]
      %v936 = vsel %vm428, %v933, 0.0
      %937 = vadd.xlane.f32.xlu0 %v936
      %v938 = vpop.xlane.xlu0 %937
      %v939 = vrcp.pop 32.0
      %v940 = vmul.f32 32.0, %v939
      %v941 = vsub.f32 1.0, %v940
      %v942 = vmul.f32 %v939, %v941
      %v943 = vadd.f32 %v939, %v942
      %vm944 = vweird.f32 %v939
      %v945 = vsel %vm944, %v939, %v943
      %v946 = vmul.f32 %v938, %v945
      %v947 = vsub.f32 %v933, %v946
      %v948 = vmul.f32 %v947, %v947
      %v949 = vsel %vm428, %v948, 0.0
      %950 = vadd.xlane.f32.xlu0 %v949
      %v951 = vpop.xlane.xlu0 %950
      %v952 = vmul.f32 %v951, %v945
      %v953 = vadd.f32 %v952, 1e-05
      %v954 = vrsqrt.pop %v953
      %v955 = vmul.f32 %v954, %v953
      %v956 = vmul.f32 %v955, %v954
      %v957 = vmul.f32 0.5, %v956
      %v958 = vsub.f32 1.5, %v957
      %v959 = vmul.f32 %v954, %v958
      %vm960 = vweird.f32 %v953
      %vm961 = vweird.f32 %v954
      %vm962 = vmor %vm960, %vm961
      %v963 = vsel %vm962, %v954, %v959
      %v964 = vmul.f32 %v947, %v963
      %v965 = vperm.slane %v934, 0
      %v966 = vmul.f32 %v964, %v965
      %v967 = vperm.slane %v935, 0
      %v968 = vadd.f32 %v966, %v967
      %v969 = vpack.c.bf16 %v968, %v968
      %v970 = vld [vmem:[%s5] sm:$0xf]
      %v971 = vld [vmem:[%s5 + $0x4] sm:$0xf]
      %v972 = vld [vmem:[%s5 + $0x8] sm:$0xf]
      %v973 = vld [vmem:[%s5 + $0xc] sm:$0xf]
      %v974 = vld [vmem:[%s9] sm:$0x1]
      %v976 = vperm.slane %v974, 0
      %v982 = vunpack.c.l.b16 %v970
      %v983 = vunpack.c.l.b16 %v971
      %v984 = vunpack.c.l.b16 %v972
      %v985 = vunpack.c.l.b16 %v973
      %v986 = vpack.c.b16 %v983, %v982
      %v987 = vpack.c.b16 %v985, %v984
      %v991 = vsel %vm428, %v969, 0
      %993 = vmatpush.bf16.msra.mxu0 0
      %994 = vmatpush.bf16.msra.mxu0 0
      %995 = vmatpush.bf16.msra.mxu0 0
      %996 = vmatpush.bf16.msra.mxu0 0
      %997 = vmatpush.bf16.msra.mxu0 0
      %998 = vmatpush.bf16.msra.mxu0 0
      %999 = vmatpush.bf16.msra.mxu0 %v987
      %1000 = vmatpush.bf16.msra.mxu0 %v986
      %1001 = vmatmul.bf16.gmra.mxu0 %v991
      %v1002 = vpop.f32.mrf.mxu0
      %v1003 = vadd.f32 %v976, %v1002
      %v1004 = vpop.f32.mrf.mxu0
      %1005 = vdwg.mxu0
      %v1006 = vmax.f32 %v1003, 0.0
      %v1007 = vpack.c.bf16 %v1006, %v1006
      %v1008 = vld [vmem:[%s6] sm:$0xf]
      %v1009 = vld [vmem:[%s6 + $0x4] sm:$0xf]
      %v1010 = vld [vmem:[%s6 + $0x8] sm:$0xf]
      %v1011 = vld [vmem:[%s6 + $0xc] sm:$0xf]
      %v1012 = vld [vmem:[%s6 + $0x10] sm:$0xf]
      %v1013 = vld [vmem:[%s6 + $0x14] sm:$0xf]
      %v1014 = vld [vmem:[%s6 + $0x18] sm:$0xf]
      %v1015 = vld [vmem:[%s6 + $0x1c] sm:$0xf]
      %v1016 = vld [vmem:[%s7 + $0x4] sm:$0x1]
      %v1017 = vperm.slane %v1016, 0
      %v1026 = vunpack.c.l.b16 %v1008
      %v1027 = vunpack.c.l.b16 %v1009
      %v1028 = vunpack.c.l.b16 %v1010
      %v1029 = vunpack.c.l.b16 %v1011
      %v1030 = vunpack.c.l.b16 %v1012
      %v1031 = vunpack.c.l.b16 %v1013
      %v1032 = vunpack.c.l.b16 %v1014
      %v1033 = vunpack.c.l.b16 %v1015
      %v1034 = vpack.c.b16 %v1027, %v1026
      %v1035 = vpack.c.b16 %v1029, %v1028
      %v1036 = vpack.c.b16 %v1031, %v1030
      %v1037 = vpack.c.b16 %v1033, %v1032
      %vm1042 = vcmask 523264
      %v1044 = vsel %vm1042, %v1007, 0
      %1046 = vmatpush.bf16.msra.mxu0 0
      %1047 = vmatpush.bf16.msra.mxu0 0
      %1048 = vmatpush.bf16.msra.mxu0 0
      %1049 = vmatpush.bf16.msra.mxu0 0
      %1050 = vmatpush.bf16.msra.mxu0 %v1037
      %1051 = vmatpush.bf16.msra.mxu0 %v1036
      %1052 = vmatpush.bf16.msra.mxu0 %v1035
      %1053 = vmatpush.bf16.msra.mxu0 %v1034
      %1054 = vmatmul.bf16.gmra.mxu0 %v1044
      %v1055 = vpop.f32.mrf.mxu0
      %v1056 = vadd.f32 %v1017, %v1055
      %v1057 = vpop.f32.mrf.mxu0
      %1058 = vdwg.mxu0
      %v1059 = vadd.f32 %v968, %v1056
      %v1060 = vld [vmem:[%s7 + $0x5] sm:$0x1]
      %v1061 = vld [vmem:[%s7 + $0x6] sm:$0x1]
      %v1062 = vsel %vm428, %v1059, 0.0
      %1063 = vadd.xlane.f32.xlu0 %v1062
      %v1064 = vpop.xlane.xlu0 %1063
      %v1065 = vmul.f32 %v1064, %v945
      %v1066 = vsub.f32 %v1059, %v1065
      %v1067 = vmul.f32 %v1066, %v1066
      %v1068 = vsel %vm428, %v1067, 0.0
      %1069 = vadd.xlane.f32.xlu0 %v1068
      %v1070 = vpop.xlane.xlu0 %1069
      %v1071 = vmul.f32 %v1070, %v945
      %v1072 = vadd.f32 %v1071, 1e-05
      %v1073 = vrsqrt.pop %v1072
      %v1074 = vmul.f32 %v1073, %v1072
      %v1075 = vmul.f32 %v1074, %v1073
      %v1076 = vmul.f32 0.5, %v1075
      %v1077 = vsub.f32 1.5, %v1076
      %v1078 = vmul.f32 %v1073, %v1077
      %vm1079 = vweird.f32 %v1072
      %vm1080 = vweird.f32 %v1073
      %vm1081 = vmor %vm1079, %vm1080
      %v1082 = vsel %vm1081, %v1073, %v1078
      %v1083 = vmul.f32 %v1066, %v1082
      %v1084 = vperm.slane %v1060, 0
      %v1085 = vmul.f32 %v1083, %v1084
      %v1086 = vperm.slane %v1061, 0
      %v1087 = vadd.f32 %v1085, %v1086
      %v1088 = vpack.c.bf16 %v1087, %v1087
      %vm1089 = vcmask 257024
      %1090 = vst.msk [vmem:[%s356] sm:$0xf] %vm1089, %v1088
      %p1091 = scmp.lt.s32.totalorder %s33, 1
      %s1092 = scalar_select %p1091, %s33, 1
      %p1093 = scmp.lt.s32.totalorder %s34, 0
      %s1094 = scalar_select %p1093, %s34, 0
      %s1095 = sadd.s32 %s1094, %s1092
      %s1096 = smul.addr %s1095, 4
      %s1097 = scalar_lea.vmem %s10, %s1096
      // Predicated region
      $region61: #{_bert_encoder_jit.2} parent=55 // pred_check
        %p1098 = pneg %p255
      $region62: #{_bert_encoder_jit.2} parent=55 // pred_check_branch
        %1100 = sbr.rel (%p1098) target = $region64
      $region63: #{_bert_encoder_jit.2} parent=55 // pred_region
        _
      $region64: #{_bert_encoder_jit.2} parent=55 // pred_fallthru
        _
    $region56: #{_bert_encoder_jit.2} parent=5 // pred_fallthru
      _
    %p1101 = scmp.le.s32.totalorder 2, %s24
    // Predicated region
    $region65: #{_bert_encoder_jit.2} parent=5 // pred_check
      %p1102 = pneg %p1101
    $region66: #{_bert_encoder_jit.2} parent=5 // pred_check_branch
      %1104 = sbr.rel (%p1102) target = $region68
    $region67: #{_bert_encoder_jit.2} parent=5 // pred_region
      %s1105 = ssub.s32 %s24, 2
      // Predicated region
      $region69: #{_bert_encoder_jit.2} parent=67 // pred_check
        %p1106 = pneg %p261
      $region70: #{_bert_encoder_jit.2} parent=67 // pred_check_branch
        %1108 = sbr.rel (%p1106) target = $region72
      $region71: #{_bert_encoder_jit.2} parent=67 // pred_region
        %p1109 = scmp.lt.s32.totalorder %s35, 1
        %s1110 = scalar_select %p1109, %s35, 1
        %p1111 = scmp.lt.s32.totalorder %s36, 0
        %s1112 = scalar_select %p1111, %s36, 0
        %s1113 = sadd.s32 %s1112, %s1110
        %s1114 = smul.addr %s1113, 4
        %s1115 = scalar_lea.vmem %s10, %s1114
      $region72: #{_bert_encoder_jit.2} parent=67 // pred_fallthru
        _
    $region68: #{_bert_encoder_jit.2} parent=5 // pred_fallthru
      _
  $region6: #{_bert_encoder_jit.2} parent=0 // loop_footer
    %s28 = sadd.s32 1, %s24
  $region7: #{_bert_encoder_jit.2} parent=0 // loop_footer_branch
    %23 = sbr.rel target = $region3
  $region8: #{_bert_encoder_jit.2} parent=0 // loop_exit
    _

</llo_original>
